<compile_context>
chip_gen: v7x
topology: tpu7x:2x2x1
jax: 0.10.0
libtpu: 0.0.40
codegen_flags: <defaults>
</compile_context>

<pallas_src>
import jax
import jax.numpy as jnp
from jax import lax
from jax.experimental import pallas as pl
from jax.experimental.pallas import tpu as pltpu

TB = 256  # (user, item) pairs gathered per grid step; multiple of 128 (lane width)


def _mf_kernel(uid_ref, iid_ref, utabT_ref, itabT_ref, out_ref):
    """One grid step: TB pairs. utabT/itabT are transposed tables (D, n_rows)."""
    _, n_users = utabT_ref.shape
    _, n_items = itabT_ref.shape
    tb = uid_ref.shape[-1]

    uid = uid_ref[...]                                   # (1, TB) int32, lane-major
    iid = iid_ref[...]                                   # (1, TB) int32

    # One-hot gather masks built as (n_rows, TB): no index transpose needed,
    # uid/iid sublane-broadcast against a sublane iota.
    u_oh = jnp.where(
        lax.broadcasted_iota(jnp.int32, (n_users, tb), 0) == uid, 1.0, 0.0
    ).astype(jnp.float32)
    i_oh = jnp.where(
        lax.broadcasted_iota(jnp.int32, (n_items, tb), 0) == iid, 1.0, 0.0
    ).astype(jnp.float32)

    # MXU gathers: (D, n_rows) @ (n_rows, TB) -> (D, TB).  HIGHEST precision
    # keeps the gathered f32 table values exact (one-hot weights are exactly 1).
    u_rows = jnp.dot(utabT_ref[...], u_oh,
                     precision=jax.lax.Precision.HIGHEST,
                     preferred_element_type=jnp.float32)
    i_rows = jnp.dot(itabT_ref[...], i_oh,
                     precision=jax.lax.Precision.HIGHEST,
                     preferred_element_type=jnp.float32)

    # Pairwise dot product: elementwise multiply + sublane reduce -> (1, TB).
    out_ref[...] = jnp.sum(u_rows * i_rows, axis=0, keepdims=True)


def mf_forward(user, item, user_emb, item_emb):
    """Pallas equivalent of MatrixFactorization.forward (incl. broadcast path)."""
    user = jnp.asarray(user)
    item = jnp.asarray(item)
    user_emb = jnp.asarray(user_emb, dtype=jnp.float32)
    item_emb = jnp.asarray(item_emb, dtype=jnp.float32)

    # PyTorch rank-adjustment branch.
    if user.ndim > item.ndim:
        item = item.reshape(-1, 1)
    elif user.ndim < item.ndim:
        user = user.reshape(-1, 1)

    # (user_emb(user) * item_emb(item)).sum(-1) broadcasts over the index dims;
    # broadcasting the index grids first is equivalent and covers predict_item.
    out_shape = jnp.broadcast_shapes(user.shape, item.shape)
    uid = jnp.broadcast_to(user, out_shape).reshape(-1).astype(jnp.int32)
    iid = jnp.broadcast_to(item, out_shape).reshape(-1).astype(jnp.int32)

    n_users, d = user_emb.shape
    n_items, _ = item_emb.shape

    # Defensive clamp: VMEM indexing has no runtime OOB check (PyTorch would raise).
    uid = jnp.clip(uid, 0, n_users - 1)
    iid = jnp.clip(iid, 0, n_items - 1)

    b = uid.shape[0]
    g = pl.cdiv(b, TB)
    bp = g * TB
    if bp != b:
        uid = jnp.pad(uid, (0, bp - b))   # padded lanes computed then sliced away
        iid = jnp.pad(iid, (0, bp - b))
    uid = uid.reshape(g, TB)
    iid = iid.reshape(g, TB)

    # One-time XLA transpose outside the kernel: tables become (D, n_rows).
    utab_t = user_emb.T
    itab_t = item_emb.T

    out = pl.pallas_call(
        _mf_kernel,
        out_shape=jax.ShapeDtypeStruct((g, TB), jnp.float32),
        grid_spec=pltpu.PrefetchScalarGridSpec(
            num_scalar_prefetch=0,
            grid=(g,),
            in_specs=[
                pl.BlockSpec((1, TB), lambda i: (i, 0)),        # uid block (VMEM)
                pl.BlockSpec((1, TB), lambda i: (i, 0)),        # iid block (VMEM)
                pl.BlockSpec((d, n_users), lambda i: (0, 0)),   # user table^T, grid-invariant
                pl.BlockSpec((d, n_items), lambda i: (0, 0)),   # item table^T, grid-invariant
            ],
            out_specs=pl.BlockSpec((1, TB), lambda i: (i, 0)),  # lane-dense output slab
        ),
        compiler_params=pltpu.CompilerParams(
            dimension_semantics=("parallel",)),
    )(uid, iid, utab_t, itab_t)

    return out.reshape(-1)[:b].reshape(out_shape)


if __name__ == "__main__":
    n_users, n_items, embedding_dim = 64, 48, 32
    batch = 16

    key = jax.random.PRNGKey(0)
    k_u, k_i, k_uid, k_iid = jax.random.split(key, 4)

    # nn.Embedding default init: N(0, 1)
    user_emb = jax.random.normal(k_u, (n_users, embedding_dim), dtype=jnp.float32)
    item_emb = jax.random.normal(k_i, (n_items, embedding_dim), dtype=jnp.float32)

    user = jax.random.randint(k_uid, (batch,), 0, n_users, dtype=jnp.int32)
    item = jax.random.randint(k_iid, (batch,), 0, n_items, dtype=jnp.int32)

    # Matched-shape path
    out = mf_forward(user, item, user_emb, item_emb)
    out = jax.block_until_ready(out)
    ref = jnp.sum(user_emb[user] * item_emb[item], axis=-1)
    assert out.shape == (batch,)
    assert jnp.allclose(out, ref, atol=1e-4, rtol=1e-4), "mismatch vs reference (matched)"

    # Broadcast path (predict_item semantics: scalar user vs all items)
    all_items = jnp.arange(n_items, dtype=jnp.int32)
    out2 = mf_forward(jnp.asarray(3, dtype=jnp.int32), all_items, user_emb, item_emb)
    out2 = jax.block_until_ready(out2)
    ref2 = jnp.sum(user_emb[3][None, None, :] * item_emb[all_items][None, :, :], axis=-1)
    assert out2.shape == (1, n_items)
    assert jnp.allclose(out2, ref2, atol=1e-4, rtol=1e-4), "mismatch vs reference (broadcast)"

    print("KERNEL_OK")
</pallas_src>

<mosaic_0001>
module attributes {stable_mosaic.version = 11 : i64} {
  func.func @_mf_kernel(%arg0: i32, %arg1: memref<1x256xi32, #tpu.memory_space<vmem>>, %arg2: memref<1x256xi32, #tpu.memory_space<vmem>>, %arg3: memref<32x64xf32, #tpu.memory_space<vmem>>, %arg4: memref<32x48xf32, #tpu.memory_space<vmem>>, %arg5: memref<1x256xf32, #tpu.memory_space<vmem>>) attributes {dimension_semantics = [#tpu.dimension_semantics<parallel>], iteration_bounds = array<i64: 1>, scalar_prefetch = 0 : i64, scratch_operands = 0 : i64, tpu.core_type = #tpu.core_type<tc>, window_params = [{transform_indices = @transform_0, window_bounds = array<i64: 1, 256>}, {transform_indices = @transform_1, window_bounds = array<i64: 1, 256>}, {pipeline_mode = #tpu.pipeline_mode<synchronous>, transform_indices = @transform_2, window_bounds = array<i64: 32, 64>}, {pipeline_mode = #tpu.pipeline_mode<synchronous>, transform_indices = @transform_3, window_bounds = array<i64: 32, 48>}, {transform_indices = @transform_4, window_bounds = array<i64: 1, 256>}]} {
    %c0 = arith.constant 0 : index
    %c0_0 = arith.constant 0 : index
    %0 = vector.load %arg1[%c0, %c0_0] : memref<1x256xi32, #tpu.memory_space<vmem>>, vector<1x256xi32>
    %c0_1 = arith.constant 0 : index
    %c0_2 = arith.constant 0 : index
    %1 = vector.load %arg2[%c0_1, %c0_2] : memref<1x256xi32, #tpu.memory_space<vmem>>, vector<1x256xi32>
    %2 = tpu.iota {dimensions = array<i32: 0>} : vector<64x256xi32>
    %3 = vector.broadcast %0 : vector<1x256xi32> to vector<64x256xi32>
    %4 = arith.cmpi eq, %2, %3 : vector<64x256xi32>
    %cst = arith.constant 1.000000e+00 : f32
    %cst_3 = arith.constant 0.000000e+00 : f32
    %5 = vector.broadcast %cst : f32 to vector<64x256xf32>
    %6 = vector.broadcast %cst_3 : f32 to vector<64x256xf32>
    %7 = arith.select %4, %5, %6 : vector<64x256xi1>, vector<64x256xf32>
    %8 = tpu.iota {dimensions = array<i32: 0>} : vector<48x256xi32>
    %9 = vector.broadcast %1 : vector<1x256xi32> to vector<48x256xi32>
    %10 = arith.cmpi eq, %8, %9 : vector<48x256xi32>
    %cst_4 = arith.constant 1.000000e+00 : f32
    %cst_5 = arith.constant 0.000000e+00 : f32
    %11 = vector.broadcast %cst_4 : f32 to vector<48x256xf32>
    %12 = vector.broadcast %cst_5 : f32 to vector<48x256xf32>
    %13 = arith.select %10, %11, %12 : vector<48x256xi1>, vector<48x256xf32>
    %c0_6 = arith.constant 0 : index
    %c0_7 = arith.constant 0 : index
    %14 = vector.load %arg3[%c0_6, %c0_7] : memref<32x64xf32, #tpu.memory_space<vmem>>, vector<32x64xf32>
    %cst_8 = arith.constant dense<0.000000e+00> : vector<32x256xf32>
    %15 = tpu.matmul %14, %7, %cst_8 {dimension_numbers = #tpu.dot_dimension_numbers<[1], [0], [0], [1], [0, 0, 1, 1], [], []>, precision = #tpu.contract_precision<fp32>} : vector<32x64xf32>, vector<64x256xf32>, vector<32x256xf32> -> vector<32x256xf32>
    %c0_9 = arith.constant 0 : index
    %c0_10 = arith.constant 0 : index
    %16 = vector.load %arg4[%c0_9, %c0_10] : memref<32x48xf32, #tpu.memory_space<vmem>>, vector<32x48xf32>
    %cst_11 = arith.constant dense<0.000000e+00> : vector<32x256xf32>
    %17 = tpu.matmul %16, %13, %cst_11 {dimension_numbers = #tpu.dot_dimension_numbers<[1], [0], [0], [1], [0, 0, 1, 1], [], []>, precision = #tpu.contract_precision<fp32>} : vector<32x48xf32>, vector<48x256xf32>, vector<32x256xf32> -> vector<32x256xf32>
    %18 = arith.mulf %15, %17 : vector<32x256xf32>
    %cst_12 = arith.constant dense<0.000000e+00> : vector<256xf32>
    %19 = vector.multi_reduction <add>, %18, %cst_12 [0] : vector<32x256xf32> to vector<256xf32>
    %20 = vector.shape_cast %19 : vector<256xf32> to vector<1x256xf32>
    %c0_13 = arith.constant 0 : index
    %c0_14 = arith.constant 0 : index
    %21 = vector.load %arg5[%c0_13, %c0_14] : memref<1x256xf32, #tpu.memory_space<vmem>>, vector<1x256xf32>
    tpu.vector_store %arg5[%c0_13, %c0_14], %20 {strides = array<i32>} : memref<1x256xf32, #tpu.memory_space<vmem>>, vector<1x256xf32>,
    return
  }
  func.func @transform_0(%arg0: i32) -> (i32, i32) {
    %c0_i32 = arith.constant 0 : i32
    %c0_i32_0 = arith.constant 0 : i32
    return %arg0, %c0_i32 : i32, i32
  }
  func.func @transform_1(%arg0: i32) -> (i32, i32) {
    %c0_i32 = arith.constant 0 : i32
    %c0_i32_0 = arith.constant 0 : i32
    return %arg0, %c0_i32 : i32, i32
  }
  func.func @transform_2(%arg0: i32) -> (i32, i32) {
    %c0_i32 = arith.constant 0 : i32
    %c0_i32_0 = arith.constant 0 : i32
    %c0_i32_1 = arith.constant 0 : i32
    return %c0_i32, %c0_i32_0 : i32, i32
  }
  func.func @transform_3(%arg0: i32) -> (i32, i32) {
    %c0_i32 = arith.constant 0 : i32
    %c0_i32_0 = arith.constant 0 : i32
    %c0_i32_1 = arith.constant 0 : i32
    return %c0_i32, %c0_i32_0 : i32, i32
  }
  func.func @transform_4(%arg0: i32) -> (i32, i32) {
    %c0_i32 = arith.constant 0 : i32
    %c0_i32_0 = arith.constant 0 : i32
    return %arg0, %c0_i32 : i32, i32
  }
}

</mosaic_0001>

<llo_original>
// kernel: tpu_custom_call.1
$region0: #{tpu_custom_call.1}
  #allocation0 [shape = 'u32[]', space=smem, size = 0x4, offset = 0x4, fixed_abs, tag = 'smem constant byte address 0x4 - core index']
  #allocation1 [shape = 'u32[144,128]{1,0:T(1,128)}', space=vmem, size = 0x12000, scoped, tag = 'internal scratch']
  %s0 = inlined_call_operand.hbm [shape: s32[1,256], index: 0, kind: input, shape index: {}]
  %s1 = inlined_call_operand.vmem [shape: s32[1,256], index: 1, kind: input, shape index: {}]
  %s2 = inlined_call_operand.hbm [shape: f32[32,64], index: 2, kind: input, shape index: {}]
  %s3 = inlined_call_operand.hbm [shape: f32[32,48], index: 3, kind: input, shape index: {}]
  %s4 = inlined_call_operand.hbm [shape: f32[1,256], index: 4, kind: output, shape index: {}]
  %s5 = sld [smem:[#allocation0]]
  $region38: #{tpu_custom_call.1} parent=0
    _
  %s7 = ssub.s32 1, %s5
  %s8 = scalar_select 0, %s7, %s5
  $region1: #{tpu_custom_call.1} parent=0
    #allocation2 [shape = 'u8[1024]{0}', space=vmem, size = 0x400, scoped, tag = 'input window, operand 0, single buffered']
    #allocation3 [shape = 's32[1]{0}', space=sflag, size = 0x4, scoped, tag = 'scoped memory for tpu_custom_call.1']
    #allocation4 [shape = 's32[1]{0}', space=sflag, size = 0x4, scoped, tag = 'scoped memory for tpu_custom_call.1']
    #allocation5 [shape = 'u8[16384]{0}', space=vmem, size = 0x4000, scoped, tag = 'input window, operand 2, single buffered']
    #allocation6 [shape = 's32[1]{0}', space=sflag, size = 0x4, scoped, tag = 'scoped memory for tpu_custom_call.1']
    #allocation7 [shape = 'u8[16384]{0}', space=vmem, size = 0x4000, scoped, tag = 'input window, operand 3, single buffered']
    #allocation8 [shape = 'u8[1024]{0}', space=vmem, size = 0x400, scoped, tag = 'output window, operand 0, single buffered']
    %9 = vsyncpa [#allocation3], 0
    %10 = vsyncpa [#allocation6], 0
    %11 = vsyncpa [#allocation4], 0
    // Predicated region
    $region2: #{tpu_custom_call.1} parent=1 // pred_check
      _
    $region3: #{tpu_custom_call.1} parent=1 // pred_check_branch
      %13 = sbr.rel (0) target = $region5
    $region4: #{tpu_custom_call.1} parent=1 // pred_region
      %s15 = ssub.s32 32, 32
      %16 = vsyncadd [#allocation3], %s15
      %s18 = sshll.u32 [#allocation2], 4
      %s19 = int_to_ptr.vmem [resolvable:$true] %s18
      %21 = dma.hbm_to_vmem [thread:$0]  %s0, 32, %s19, [#allocation3]
    $region5: #{tpu_custom_call.1} parent=1 // pred_fallthru
      _
    // Predicated region
    $region6: #{tpu_custom_call.1} parent=1 // pred_check
      _
    $region7: #{tpu_custom_call.1} parent=1 // pred_check_branch
      %23 = sbr.rel (0) target = $region9
    $region8: #{tpu_custom_call.1} parent=1 // pred_region
      _
    $region9: #{tpu_custom_call.1} parent=1 // pred_fallthru
      _
    // Predicated region
    $region10: #{tpu_custom_call.1} parent=1 // pred_check
      _
    $region11: #{tpu_custom_call.1} parent=1 // pred_check_branch
      %25 = sbr.rel (0) target = $region13
    $region12: #{tpu_custom_call.1} parent=1 // pred_region
      %s27 = ssub.s32 512, 512
      %28 = vsyncadd [#allocation6], %s27
      %s29 = sshll.u32 [#allocation5], 4
      %s30 = int_to_ptr.vmem [resolvable:$true] %s29
      %35 = dma.hbm_to_vmem [thread:$0]  %s2, 512, %s30, [#allocation6], 128, 128, 8
    $region13: #{tpu_custom_call.1} parent=1 // pred_fallthru
      _
    // Predicated region
    $region14: #{tpu_custom_call.1} parent=1 // pred_check
      _
    $region15: #{tpu_custom_call.1} parent=1 // pred_check_branch
      %37 = sbr.rel (0) target = $region17
    $region16: #{tpu_custom_call.1} parent=1 // pred_region
      %s39 = ssub.s32 512, 512
      %40 = vsyncadd [#allocation6], %s39
      %s41 = sshll.u32 [#allocation7], 4
      %s42 = int_to_ptr.vmem [resolvable:$true] %s41
      %47 = dma.hbm_to_vmem [thread:$0]  %s3, 512, %s42, [#allocation6], 128, 128, 8
    $region17: #{tpu_custom_call.1} parent=1 // pred_fallthru
      _
    // Predicated region
    $region18: #{tpu_custom_call.1} parent=1 // pred_check
      _
    $region19: #{tpu_custom_call.1} parent=1 // pred_check_branch
      %49 = sbr.rel (0) target = $region21
    $region20: #{tpu_custom_call.1} parent=1 // pred_region
      %50 = dma.done [#allocation3], 32
    $region21: #{tpu_custom_call.1} parent=1 // pred_fallthru
      _
    // Predicated region
    $region22: #{tpu_custom_call.1} parent=1 // pred_check
      _
    $region23: #{tpu_custom_call.1} parent=1 // pred_check_branch
      %52 = sbr.rel (0) target = $region25
    $region24: #{tpu_custom_call.1} parent=1 // pred_region
      %53 = dma.done [#allocation6], 512
    $region25: #{tpu_custom_call.1} parent=1 // pred_fallthru
      _
    // Predicated region
    $region26: #{tpu_custom_call.1} parent=1 // pred_check
      _
    $region27: #{tpu_custom_call.1} parent=1 // pred_check_branch
      %55 = sbr.rel (0) target = $region29
    $region28: #{tpu_custom_call.1} parent=1 // pred_region
      %56 = dma.done [#allocation6], 512
    $region29: #{tpu_custom_call.1} parent=1 // pred_fallthru
      _
    %v57 = vld [vmem:[#allocation2] sm:$0x3]
    %v58 = vld [vmem:[%s1] sm:$0x3]
    %v59 = vlaneseq
    %v60 = vshrl.u32 %v59, 7
    %v61 = vadd.s32 %v60, 8
    %v62 = vadd.s32 %v60, 16
    %v63 = vadd.s32 %v60, 24
    %v64 = vadd.s32 %v60, 32
    %v65 = vadd.s32 %v60, 40
    %v66 = vadd.s32 %v60, 48
    %v67 = vadd.s32 %v60, 56
    %v68 = vlaneseq
    %v69 = vshrl.u32 %v68, 7
    %v70 = vsub.s32 0, %v69
    %v71 = vrot.slane %v57, %v70
    %v72 = vlaneseq
    %v73 = vshrl.u32 %v72, 7
    %v74 = vsub.s32 1, %v73
    %v75 = vrot.slane %v57, %v74
    %vm76 = vcmp.eq.s32.totalorder %v60, %v71
    %vm77 = vcmp.eq.s32.totalorder %v60, %v75
    %vm78 = vcmp.eq.s32.totalorder %v61, %v71
    %vm79 = vcmp.eq.s32.totalorder %v61, %v75
    %vm80 = vcmp.eq.s32.totalorder %v62, %v71
    %vm81 = vcmp.eq.s32.totalorder %v62, %v75
    %vm82 = vcmp.eq.s32.totalorder %v63, %v71
    %vm83 = vcmp.eq.s32.totalorder %v63, %v75
    %vm84 = vcmp.eq.s32.totalorder %v64, %v71
    %vm85 = vcmp.eq.s32.totalorder %v64, %v75
    %vm86 = vcmp.eq.s32.totalorder %v65, %v71
    %vm87 = vcmp.eq.s32.totalorder %v65, %v75
    %vm88 = vcmp.eq.s32.totalorder %v66, %v71
    %vm89 = vcmp.eq.s32.totalorder %v66, %v75
    %vm90 = vcmp.eq.s32.totalorder %v67, %v71
    %vm91 = vcmp.eq.s32.totalorder %v67, %v75
    %v92 = vsel %vm76, 1.0, 0.0
    %v93 = vsel %vm77, 1.0, 0.0
    %v94 = vsel %vm78, 1.0, 0.0
    %v95 = vsel %vm79, 1.0, 0.0
    %v96 = vsel %vm80, 1.0, 0.0
    %v97 = vsel %vm81, 1.0, 0.0
    %v98 = vsel %vm82, 1.0, 0.0
    %v99 = vsel %vm83, 1.0, 0.0
    %v100 = vsel %vm84, 1.0, 0.0
    %v101 = vsel %vm85, 1.0, 0.0
    %v102 = vsel %vm86, 1.0, 0.0
    %v103 = vsel %vm87, 1.0, 0.0
    %v104 = vsel %vm88, 1.0, 0.0
    %v105 = vsel %vm89, 1.0, 0.0
    %v106 = vsel %vm90, 1.0, 0.0
    %v107 = vsel %vm91, 1.0, 0.0
    %v108 = vlaneseq
    %v109 = vshrl.u32 %v108, 7
    %v110 = vsub.s32 0, %v109
    %v111 = vrot.slane %v58, %v110
    %v112 = vlaneseq
    %v113 = vshrl.u32 %v112, 7
    %v114 = vsub.s32 1, %v113
    %v115 = vrot.slane %v58, %v114
    %vm116 = vcmp.eq.s32.totalorder %v60, %v111
    %vm117 = vcmp.eq.s32.totalorder %v60, %v115
    %vm118 = vcmp.eq.s32.totalorder %v61, %v111
    %vm119 = vcmp.eq.s32.totalorder %v61, %v115
    %vm120 = vcmp.eq.s32.totalorder %v62, %v111
    %vm121 = vcmp.eq.s32.totalorder %v62, %v115
    %vm122 = vcmp.eq.s32.totalorder %v63, %v111
    %vm123 = vcmp.eq.s32.totalorder %v63, %v115
    %vm124 = vcmp.eq.s32.totalorder %v64, %v111
    %vm125 = vcmp.eq.s32.totalorder %v64, %v115
    %vm126 = vcmp.eq.s32.totalorder %v65, %v111
    %vm127 = vcmp.eq.s32.totalorder %v65, %v115
    %v128 = vsel %vm116, 1.0, 0.0
    %v129 = vsel %vm117, 1.0, 0.0
    %v130 = vsel %vm118, 1.0, 0.0
    %v131 = vsel %vm119, 1.0, 0.0
    %v132 = vsel %vm120, 1.0, 0.0
    %v133 = vsel %vm121, 1.0, 0.0
    %v134 = vsel %vm122, 1.0, 0.0
    %v135 = vsel %vm123, 1.0, 0.0
    %v136 = vsel %vm124, 1.0, 0.0
    %v137 = vsel %vm125, 1.0, 0.0
    %v138 = vsel %vm126, 1.0, 0.0
    %v139 = vsel %vm127, 1.0, 0.0
    %v140 = vld [vmem:[#allocation5] sm:$0xff]
    %v141 = vld [vmem:[#allocation5 + $0x8] sm:$0xff]
    %v142 = vld [vmem:[#allocation5 + $0x10] sm:$0xff]
    %v143 = vld [vmem:[#allocation5 + $0x18] sm:$0xff]
    %vm144 = vcmask 523264
    %v146 = vsel %vm144, %v140, 0
    %v149 = vsel %vm144, %v141, 0
    %v152 = vsel %vm144, %v142, 0
    %v155 = vsel %vm144, %v143, 0
    %157 = vmatprep.subr.mxu0 %v93
    %158 = vmatpush1.msra.mxu0 %v92
    %159 = vmatprep.subr.mxu0 %v95
    %160 = vmatpush1.msra.mxu0 %v94
    %161 = vmatprep.subr.mxu0 %v97
    %162 = vmatpush1.msra.mxu0 %v96
    %163 = vmatprep.subr.mxu0 %v99
    %164 = vmatpush1.msra.mxu0 %v98
    %165 = vmatprep.subr.mxu0 %v101
    %166 = vmatpush1.msra.mxu0 %v100
    %167 = vmatprep.subr.mxu0 %v103
    %168 = vmatpush1.msra.mxu0 %v102
    %169 = vmatprep.subr.mxu0 %v105
    %170 = vmatpush1.msra.mxu0 %v104
    %171 = vmatprep.subr.mxu0 %v107
    %172 = vmatpush1.msra.mxu0 %v106
    %173 = vmatprep.subr.mxu0 0.0
    %174 = vmatpush1.msra.mxu0 0.0
    %175 = vmatprep.subr.mxu0 0.0
    %176 = vmatpush1.msra.mxu0 0.0
    %177 = vmatprep.subr.mxu0 0.0
    %178 = vmatpush1.msra.mxu0 0.0
    %179 = vmatprep.subr.mxu0 0.0
    %180 = vmatpush1.msra.mxu0 0.0
    %181 = vmatprep.subr.mxu0 0.0
    %182 = vmatpush1.msra.mxu0 0.0
    %183 = vmatprep.subr.mxu0 0.0
    %184 = vmatpush1.msra.mxu0 0.0
    %185 = vmatprep.subr.mxu0 0.0
    %186 = vmatpush1.msra.mxu0 0.0
    %187 = vmatprep.subr.mxu0 0.0
    %188 = vmatpush1.msra.mxu0 0.0
    %189 = vmatprep.subr.mxu0 0.0
    %190 = vmatpush1.msra.mxu0 0.0
    %191 = vmatprep.subr.mxu0 0.0
    %192 = vmatpush1.msra.mxu0 0.0
    %193 = vmatprep.subr.mxu0 0.0
    %194 = vmatpush1.msra.mxu0 0.0
    %195 = vmatprep.subr.mxu0 0.0
    %196 = vmatpush1.msra.mxu0 0.0
    %197 = vmatprep.subr.mxu0 0.0
    %198 = vmatpush1.msra.mxu0 0.0
    %199 = vmatprep.subr.mxu0 0.0
    %200 = vmatpush1.msra.mxu0 0.0
    %201 = vmatprep.subr.mxu0 0.0
    %202 = vmatpush1.msra.mxu0 0.0
    %203 = vmatprep.subr.mxu0 0.0
    %204 = vmatpush1.msra.mxu0 0.0
    %205 = vmatprep.subr.mxu0 0.0
    %206 = vmatpush1.msra.mxu0 0.0
    %207 = vmatprep.subr.mxu0 0.0
    %208 = vmatpush1.msra.mxu0 0.0
    %209 = vmatprep.subr.mxu0 0.0
    %210 = vmatpush1.msra.mxu0 0.0
    %211 = vmatprep.subr.mxu0 0.0
    %212 = vmatpush1.msra.mxu0 0.0
    %213 = vmatprep.subr.mxu0 0.0
    %214 = vmatpush1.msra.mxu0 0.0
    %215 = vmatprep.subr.mxu0 0.0
    %216 = vmatpush1.msra.mxu0 0.0
    %217 = vmatprep.subr.mxu0 0.0
    %218 = vmatpush1.msra.mxu0 0.0
    %219 = vmatprep.subr.mxu0 0.0
    %220 = vmatpush1.msra.mxu0 0.0
    %221 = vmatprep.mubr.f32.mxu0 0.0
    %v222 = vand.u32 %v146, 4294901760
    %v223 = vsub.f32 %v146, %v222
    %v224 = vand.u32 %v223, 4294901760
    %v225 = vsub.f32 %v223, %v224
    %v226 = vand.u32 %v225, 4294901760
    %227 = vmatmul.mubr.f32.gmra.mrb[0].mxu0 %v226
    %v228 = vpop.f32.mrb[0].mxu0
    %v229 = vadd.f32 0.0, %v228
    %v230 = vpop.f32.mrb[0].mxu0
    %v231 = vadd.f32 0.0, %v230
    %232 = vmatprep.mubr.f32.mxu0 0.0
    %v233 = vand.u32 %v149, 4294901760
    %v234 = vsub.f32 %v149, %v233
    %v235 = vand.u32 %v234, 4294901760
    %v236 = vsub.f32 %v234, %v235
    %v237 = vand.u32 %v236, 4294901760
    %238 = vmatmul.mubr.f32.gmra.mrb[0].mxu0 %v237
    %v239 = vpop.f32.mrb[0].mxu0
    %v240 = vadd.f32 0.0, %v239
    %v241 = vpop.f32.mrb[0].mxu0
    %v242 = vadd.f32 0.0, %v241
    %243 = vmatprep.mubr.f32.mxu0 0.0
    %v244 = vand.u32 %v152, 4294901760
    %v245 = vsub.f32 %v152, %v244
    %v246 = vand.u32 %v245, 4294901760
    %v247 = vsub.f32 %v245, %v246
    %v248 = vand.u32 %v247, 4294901760
    %249 = vmatmul.mubr.f32.gmra.mrb[0].mxu0 %v248
    %v250 = vpop.f32.mrb[0].mxu0
    %v251 = vadd.f32 0.0, %v250
    %v252 = vpop.f32.mrb[0].mxu0
    %v253 = vadd.f32 0.0, %v252
    %254 = vmatprep.mubr.f32.mxu0 0.0
    %v255 = vand.u32 %v155, 4294901760
    %v256 = vsub.f32 %v155, %v255
    %v257 = vand.u32 %v256, 4294901760
    %v258 = vsub.f32 %v256, %v257
    %v259 = vand.u32 %v258, 4294901760
    %260 = vmatmul.mubr.f32.gmra.mrb[0].mxu0 %v259
    %v261 = vpop.f32.mrb[0].mxu0
    %v262 = vadd.f32 0.0, %v261
    %v263 = vpop.f32.mrb[0].mxu0
    %v264 = vadd.f32 0.0, %v263
    %265 = vdwg.mxu0
    %v266 = vsub.f32 %v93, %v93
    %v267 = vand.u32 %v266, 4294901760
    %v268 = vsub.f32 %v266, %v267
    %v269 = vand.u32 %v268, 4294901760
    %270 = vmatprep.subr.mxu0 %v269
    %v271 = vsub.f32 %v92, %v92
    %v272 = vand.u32 %v271, 4294901760
    %v273 = vsub.f32 %v271, %v272
    %v274 = vand.u32 %v273, 4294901760
    %275 = vmatpush1.msra.mxu0 %v274
    %v276 = vsub.f32 %v95, %v95
    %v277 = vand.u32 %v276, 4294901760
    %v278 = vsub.f32 %v276, %v277
    %v279 = vand.u32 %v278, 4294901760
    %280 = vmatprep.subr.mxu0 %v279
    %v281 = vsub.f32 %v94, %v94
    %v282 = vand.u32 %v281, 4294901760
    %v283 = vsub.f32 %v281, %v282
    %v284 = vand.u32 %v283, 4294901760
    %285 = vmatpush1.msra.mxu0 %v284
    %v286 = vsub.f32 %v97, %v97
    %v287 = vand.u32 %v286, 4294901760
    %v288 = vsub.f32 %v286, %v287
    %v289 = vand.u32 %v288, 4294901760
    %290 = vmatprep.subr.mxu0 %v289
    %v291 = vsub.f32 %v96, %v96
    %v292 = vand.u32 %v291, 4294901760
    %v293 = vsub.f32 %v291, %v292
    %v294 = vand.u32 %v293, 4294901760
    %295 = vmatpush1.msra.mxu0 %v294
    %v296 = vsub.f32 %v99, %v99
    %v297 = vand.u32 %v296, 4294901760
    %v298 = vsub.f32 %v296, %v297
    %v299 = vand.u32 %v298, 4294901760
    %300 = vmatprep.subr.mxu0 %v299
    %v301 = vsub.f32 %v98, %v98
    %v302 = vand.u32 %v301, 4294901760
    %v303 = vsub.f32 %v301, %v302
    %v304 = vand.u32 %v303, 4294901760
    %305 = vmatpush1.msra.mxu0 %v304
    %v306 = vsub.f32 %v101, %v101
    %v307 = vand.u32 %v306, 4294901760
    %v308 = vsub.f32 %v306, %v307
    %v309 = vand.u32 %v308, 4294901760
    %310 = vmatprep.subr.mxu0 %v309
    %v311 = vsub.f32 %v100, %v100
    %v312 = vand.u32 %v311, 4294901760
    %v313 = vsub.f32 %v311, %v312
    %v314 = vand.u32 %v313, 4294901760
    %315 = vmatpush1.msra.mxu0 %v314
    %v316 = vsub.f32 %v103, %v103
    %v317 = vand.u32 %v316, 4294901760
    %v318 = vsub.f32 %v316, %v317
    %v319 = vand.u32 %v318, 4294901760
    %320 = vmatprep.subr.mxu0 %v319
    %v321 = vsub.f32 %v102, %v102
    %v322 = vand.u32 %v321, 4294901760
    %v323 = vsub.f32 %v321, %v322
    %v324 = vand.u32 %v323, 4294901760
    %325 = vmatpush1.msra.mxu0 %v324
    %v326 = vsub.f32 %v105, %v105
    %v327 = vand.u32 %v326, 4294901760
    %v328 = vsub.f32 %v326, %v327
    %v329 = vand.u32 %v328, 4294901760
    %330 = vmatprep.subr.mxu0 %v329
    %v331 = vsub.f32 %v104, %v104
    %v332 = vand.u32 %v331, 4294901760
    %v333 = vsub.f32 %v331, %v332
    %v334 = vand.u32 %v333, 4294901760
    %335 = vmatpush1.msra.mxu0 %v334
    %v336 = vsub.f32 %v107, %v107
    %v337 = vand.u32 %v336, 4294901760
    %v338 = vsub.f32 %v336, %v337
    %v339 = vand.u32 %v338, 4294901760
    %340 = vmatprep.subr.mxu0 %v339
    %v341 = vsub.f32 %v106, %v106
    %v342 = vand.u32 %v341, 4294901760
    %v343 = vsub.f32 %v341, %v342
    %v344 = vand.u32 %v343, 4294901760
    %345 = vmatpush1.msra.mxu0 %v344
    %346 = vmatprep.subr.mxu0 0.0
    %347 = vmatpush1.msra.mxu0 0.0
    %348 = vmatprep.subr.mxu0 0.0
    %349 = vmatpush1.msra.mxu0 0.0
    %350 = vmatprep.subr.mxu0 0.0
    %351 = vmatpush1.msra.mxu0 0.0
    %352 = vmatprep.subr.mxu0 0.0
    %353 = vmatpush1.msra.mxu0 0.0
    %354 = vmatprep.subr.mxu0 0.0
    %355 = vmatpush1.msra.mxu0 0.0
    %356 = vmatprep.subr.mxu0 0.0
    %357 = vmatpush1.msra.mxu0 0.0
    %358 = vmatprep.subr.mxu0 0.0
    %359 = vmatpush1.msra.mxu0 0.0
    %360 = vmatprep.subr.mxu0 0.0
    %361 = vmatpush1.msra.mxu0 0.0
    %362 = vmatprep.subr.mxu0 0.0
    %363 = vmatpush1.msra.mxu0 0.0
    %364 = vmatprep.subr.mxu0 0.0
    %365 = vmatpush1.msra.mxu0 0.0
    %366 = vmatprep.subr.mxu0 0.0
    %367 = vmatpush1.msra.mxu0 0.0
    %368 = vmatprep.subr.mxu0 0.0
    %369 = vmatpush1.msra.mxu0 0.0
    %370 = vmatprep.subr.mxu0 0.0
    %371 = vmatpush1.msra.mxu0 0.0
    %372 = vmatprep.subr.mxu0 0.0
    %373 = vmatpush1.msra.mxu0 0.0
    %374 = vmatprep.subr.mxu0 0.0
    %375 = vmatpush1.msra.mxu0 0.0
    %376 = vmatprep.subr.mxu0 0.0
    %377 = vmatpush1.msra.mxu0 0.0
    %378 = vmatprep.subr.mxu0 0.0
    %379 = vmatpush1.msra.mxu0 0.0
    %380 = vmatprep.subr.mxu0 0.0
    %381 = vmatpush1.msra.mxu0 0.0
    %382 = vmatprep.subr.mxu0 0.0
    %383 = vmatpush1.msra.mxu0 0.0
    %384 = vmatprep.subr.mxu0 0.0
    %385 = vmatpush1.msra.mxu0 0.0
    %386 = vmatprep.subr.mxu0 0.0
    %387 = vmatpush1.msra.mxu0 0.0
    %388 = vmatprep.subr.mxu0 0.0
    %389 = vmatpush1.msra.mxu0 0.0
    %390 = vmatprep.subr.mxu0 0.0
    %391 = vmatpush1.msra.mxu0 0.0
    %392 = vmatprep.subr.mxu0 0.0
    %393 = vmatpush1.msra.mxu0 0.0
    %394 = vmatprep.mubr.f32.mxu0 0.0
    %v395 = vand.u32 %v146, 4294901760
    %396 = vmatmul.mubr.f32.gmra.mrb[0].mxu0 %v395
    %v397 = vpop.f32.mrb[0].mxu0
    %v398 = vadd.f32 %v229, %v397
    %v399 = vpop.f32.mrb[0].mxu0
    %v400 = vadd.f32 %v231, %v399
    %401 = vmatprep.mubr.f32.mxu0 0.0
    %v402 = vand.u32 %v149, 4294901760
    %403 = vmatmul.mubr.f32.gmra.mrb[0].mxu0 %v402
    %v404 = vpop.f32.mrb[0].mxu0
    %v405 = vadd.f32 %v240, %v404
    %v406 = vpop.f32.mrb[0].mxu0
    %v407 = vadd.f32 %v242, %v406
    %408 = vmatprep.mubr.f32.mxu0 0.0
    %v409 = vand.u32 %v152, 4294901760
    %410 = vmatmul.mubr.f32.gmra.mrb[0].mxu0 %v409
    %v411 = vpop.f32.mrb[0].mxu0
    %v412 = vadd.f32 %v251, %v411
    %v413 = vpop.f32.mrb[0].mxu0
    %v414 = vadd.f32 %v253, %v413
    %415 = vmatprep.mubr.f32.mxu0 0.0
    %v416 = vand.u32 %v155, 4294901760
    %417 = vmatmul.mubr.f32.gmra.mrb[0].mxu0 %v416
    %v418 = vpop.f32.mrb[0].mxu0
    %v419 = vadd.f32 %v262, %v418
    %v420 = vpop.f32.mrb[0].mxu0
    %v421 = vadd.f32 %v264, %v420
    %422 = vdwg.mxu0
    %v423 = vsub.f32 %v93, %v93
    %424 = vmatprep.subr.mxu0 %v423
    %v425 = vsub.f32 %v92, %v92
    %426 = vmatpush1.msra.mxu0 %v425
    %v427 = vsub.f32 %v95, %v95
    %428 = vmatprep.subr.mxu0 %v427
    %v429 = vsub.f32 %v94, %v94
    %430 = vmatpush1.msra.mxu0 %v429
    %v431 = vsub.f32 %v97, %v97
    %432 = vmatprep.subr.mxu0 %v431
    %v433 = vsub.f32 %v96, %v96
    %434 = vmatpush1.msra.mxu0 %v433
    %v435 = vsub.f32 %v99, %v99
    %436 = vmatprep.subr.mxu0 %v435
    %v437 = vsub.f32 %v98, %v98
    %438 = vmatpush1.msra.mxu0 %v437
    %v439 = vsub.f32 %v101, %v101
    %440 = vmatprep.subr.mxu0 %v439
    %v441 = vsub.f32 %v100, %v100
    %442 = vmatpush1.msra.mxu0 %v441
    %v443 = vsub.f32 %v103, %v103
    %444 = vmatprep.subr.mxu0 %v443
    %v445 = vsub.f32 %v102, %v102
    %446 = vmatpush1.msra.mxu0 %v445
    %v447 = vsub.f32 %v105, %v105
    %448 = vmatprep.subr.mxu0 %v447
    %v449 = vsub.f32 %v104, %v104
    %450 = vmatpush1.msra.mxu0 %v449
    %v451 = vsub.f32 %v107, %v107
    %452 = vmatprep.subr.mxu0 %v451
    %v453 = vsub.f32 %v106, %v106
    %454 = vmatpush1.msra.mxu0 %v453
    %455 = vmatprep.subr.mxu0 0.0
    %456 = vmatpush1.msra.mxu0 0.0
    %457 = vmatprep.subr.mxu0 0.0
    %458 = vmatpush1.msra.mxu0 0.0
    %459 = vmatprep.subr.mxu0 0.0
    %460 = vmatpush1.msra.mxu0 0.0
    %461 = vmatprep.subr.mxu0 0.0
    %462 = vmatpush1.msra.mxu0 0.0
    %463 = vmatprep.subr.mxu0 0.0
    %464 = vmatpush1.msra.mxu0 0.0
    %465 = vmatprep.subr.mxu0 0.0
    %466 = vmatpush1.msra.mxu0 0.0
    %467 = vmatprep.subr.mxu0 0.0
    %468 = vmatpush1.msra.mxu0 0.0
    %469 = vmatprep.subr.mxu0 0.0
    %470 = vmatpush1.msra.mxu0 0.0
    %471 = vmatprep.subr.mxu0 0.0
    %472 = vmatpush1.msra.mxu0 0.0
    %473 = vmatprep.subr.mxu0 0.0
    %474 = vmatpush1.msra.mxu0 0.0
    %475 = vmatprep.subr.mxu0 0.0
    %476 = vmatpush1.msra.mxu0 0.0
    %477 = vmatprep.subr.mxu0 0.0
    %478 = vmatpush1.msra.mxu0 0.0
    %479 = vmatprep.subr.mxu0 0.0
    %480 = vmatpush1.msra.mxu0 0.0
    %481 = vmatprep.subr.mxu0 0.0
    %482 = vmatpush1.msra.mxu0 0.0
    %483 = vmatprep.subr.mxu0 0.0
    %484 = vmatpush1.msra.mxu0 0.0
    %485 = vmatprep.subr.mxu0 0.0
    %486 = vmatpush1.msra.mxu0 0.0
    %487 = vmatprep.subr.mxu0 0.0
    %488 = vmatpush1.msra.mxu0 0.0
    %489 = vmatprep.subr.mxu0 0.0
    %490 = vmatpush1.msra.mxu0 0.0
    %491 = vmatprep.subr.mxu0 0.0
    %492 = vmatpush1.msra.mxu0 0.0
    %493 = vmatprep.subr.mxu0 0.0
    %494 = vmatpush1.msra.mxu0 0.0
    %495 = vmatprep.subr.mxu0 0.0
    %496 = vmatpush1.msra.mxu0 0.0
    %497 = vmatprep.subr.mxu0 0.0
    %498 = vmatpush1.msra.mxu0 0.0
    %499 = vmatprep.subr.mxu0 0.0
    %500 = vmatpush1.msra.mxu0 0.0
    %501 = vmatprep.subr.mxu0 0.0
    %502 = vmatpush1.msra.mxu0 0.0
    %503 = vmatprep.mubr.f32.mxu0 0.0
    %v504 = vand.u32 %v146, 4294901760
    %v505 = vsub.f32 %v146, %v504
    %506 = vmatmul.mubr.f32.gmra.mrb[0].mxu0 %v505
    %v507 = vpop.f32.mrb[0].mxu0
    %v508 = vadd.f32 %v398, %v507
    %v509 = vpop.f32.mrb[0].mxu0
    %v510 = vadd.f32 %v400, %v509
    %511 = vmatprep.mubr.f32.mxu0 0.0
    %v512 = vand.u32 %v149, 4294901760
    %v513 = vsub.f32 %v149, %v512
    %514 = vmatmul.mubr.f32.gmra.mrb[0].mxu0 %v513
    %v515 = vpop.f32.mrb[0].mxu0
    %v516 = vadd.f32 %v405, %v515
    %v517 = vpop.f32.mrb[0].mxu0
    %v518 = vadd.f32 %v407, %v517
    %519 = vmatprep.mubr.f32.mxu0 0.0
    %v520 = vand.u32 %v152, 4294901760
    %v521 = vsub.f32 %v152, %v520
    %522 = vmatmul.mubr.f32.gmra.mrb[0].mxu0 %v521
    %v523 = vpop.f32.mrb[0].mxu0
    %v524 = vadd.f32 %v412, %v523
    %v525 = vpop.f32.mrb[0].mxu0
    %v526 = vadd.f32 %v414, %v525
    %527 = vmatprep.mubr.f32.mxu0 0.0
    %v528 = vand.u32 %v155, 4294901760
    %v529 = vsub.f32 %v155, %v528
    %530 = vmatmul.mubr.f32.gmra.mrb[0].mxu0 %v529
    %v531 = vpop.f32.mrb[0].mxu0
    %v532 = vadd.f32 %v419, %v531
    %v533 = vpop.f32.mrb[0].mxu0
    %v534 = vadd.f32 %v421, %v533
    %535 = vdwg.mxu0
    %536 = vmatprep.subr.mxu0 %v93
    %537 = vmatpush1.msra.mxu0 %v92
    %538 = vmatprep.subr.mxu0 %v95
    %539 = vmatpush1.msra.mxu0 %v94
    %540 = vmatprep.subr.mxu0 %v97
    %541 = vmatpush1.msra.mxu0 %v96
    %542 = vmatprep.subr.mxu0 %v99
    %543 = vmatpush1.msra.mxu0 %v98
    %544 = vmatprep.subr.mxu0 %v101
    %545 = vmatpush1.msra.mxu0 %v100
    %546 = vmatprep.subr.mxu0 %v103
    %547 = vmatpush1.msra.mxu0 %v102
    %548 = vmatprep.subr.mxu0 %v105
    %549 = vmatpush1.msra.mxu0 %v104
    %550 = vmatprep.subr.mxu0 %v107
    %551 = vmatpush1.msra.mxu0 %v106
    %552 = vmatprep.subr.mxu0 0.0
    %553 = vmatpush1.msra.mxu0 0.0
    %554 = vmatprep.subr.mxu0 0.0
    %555 = vmatpush1.msra.mxu0 0.0
    %556 = vmatprep.subr.mxu0 0.0
    %557 = vmatpush1.msra.mxu0 0.0
    %558 = vmatprep.subr.mxu0 0.0
    %559 = vmatpush1.msra.mxu0 0.0
    %560 = vmatprep.subr.mxu0 0.0
    %561 = vmatpush1.msra.mxu0 0.0
    %562 = vmatprep.subr.mxu0 0.0
    %563 = vmatpush1.msra.mxu0 0.0
    %564 = vmatprep.subr.mxu0 0.0
    %565 = vmatpush1.msra.mxu0 0.0
    %566 = vmatprep.subr.mxu0 0.0
    %567 = vmatpush1.msra.mxu0 0.0
    %568 = vmatprep.subr.mxu0 0.0
    %569 = vmatpush1.msra.mxu0 0.0
    %570 = vmatprep.subr.mxu0 0.0
    %571 = vmatpush1.msra.mxu0 0.0
    %572 = vmatprep.subr.mxu0 0.0
    %573 = vmatpush1.msra.mxu0 0.0
    %574 = vmatprep.subr.mxu0 0.0
    %575 = vmatpush1.msra.mxu0 0.0
    %576 = vmatprep.subr.mxu0 0.0
    %577 = vmatpush1.msra.mxu0 0.0
    %578 = vmatprep.subr.mxu0 0.0
    %579 = vmatpush1.msra.mxu0 0.0
    %580 = vmatprep.subr.mxu0 0.0
    %581 = vmatpush1.msra.mxu0 0.0
    %582 = vmatprep.subr.mxu0 0.0
    %583 = vmatpush1.msra.mxu0 0.0
    %584 = vmatprep.subr.mxu0 0.0
    %585 = vmatpush1.msra.mxu0 0.0
    %586 = vmatprep.subr.mxu0 0.0
    %587 = vmatpush1.msra.mxu0 0.0
    %588 = vmatprep.subr.mxu0 0.0
    %589 = vmatpush1.msra.mxu0 0.0
    %590 = vmatprep.subr.mxu0 0.0
    %591 = vmatpush1.msra.mxu0 0.0
    %592 = vmatprep.subr.mxu0 0.0
    %593 = vmatpush1.msra.mxu0 0.0
    %594 = vmatprep.subr.mxu0 0.0
    %595 = vmatpush1.msra.mxu0 0.0
    %596 = vmatprep.subr.mxu0 0.0
    %597 = vmatpush1.msra.mxu0 0.0
    %598 = vmatprep.subr.mxu0 0.0
    %599 = vmatpush1.msra.mxu0 0.0
    %600 = vmatprep.mubr.f32.mxu0 0.0
    %v601 = vand.u32 %v146, 4294901760
    %v602 = vsub.f32 %v146, %v601
    %v603 = vand.u32 %v602, 4294901760
    %604 = vmatmul.mubr.f32.gmra.mrb[0].mxu0 %v603
    %v605 = vpop.f32.mrb[0].mxu0
    %v606 = vadd.f32 %v508, %v605
    %v607 = vpop.f32.mrb[0].mxu0
    %v608 = vadd.f32 %v510, %v607
    %609 = vmatprep.mubr.f32.mxu0 0.0
    %v610 = vand.u32 %v149, 4294901760
    %v611 = vsub.f32 %v149, %v610
    %v612 = vand.u32 %v611, 4294901760
    %613 = vmatmul.mubr.f32.gmra.mrb[0].mxu0 %v612
    %v614 = vpop.f32.mrb[0].mxu0
    %v615 = vadd.f32 %v516, %v614
    %v616 = vpop.f32.mrb[0].mxu0
    %v617 = vadd.f32 %v518, %v616
    %618 = vmatprep.mubr.f32.mxu0 0.0
    %v619 = vand.u32 %v152, 4294901760
    %v620 = vsub.f32 %v152, %v619
    %v621 = vand.u32 %v620, 4294901760
    %622 = vmatmul.mubr.f32.gmra.mrb[0].mxu0 %v621
    %v623 = vpop.f32.mrb[0].mxu0
    %v624 = vadd.f32 %v524, %v623
    %v625 = vpop.f32.mrb[0].mxu0
    %v626 = vadd.f32 %v526, %v625
    %627 = vmatprep.mubr.f32.mxu0 0.0
    %v628 = vand.u32 %v155, 4294901760
    %v629 = vsub.f32 %v155, %v628
    %v630 = vand.u32 %v629, 4294901760
    %631 = vmatmul.mubr.f32.gmra.mrb[0].mxu0 %v630
    %v632 = vpop.f32.mrb[0].mxu0
    %v633 = vadd.f32 %v532, %v632
    %v634 = vpop.f32.mrb[0].mxu0
    %v635 = vadd.f32 %v534, %v634
    %636 = vdwg.mxu0
    %v637 = vsub.f32 %v93, %v93
    %v638 = vand.u32 %v637, 4294901760
    %639 = vmatprep.subr.mxu0 %v638
    %v640 = vsub.f32 %v92, %v92
    %v641 = vand.u32 %v640, 4294901760
    %642 = vmatpush1.msra.mxu0 %v641
    %v643 = vsub.f32 %v95, %v95
    %v644 = vand.u32 %v643, 4294901760
    %645 = vmatprep.subr.mxu0 %v644
    %v646 = vsub.f32 %v94, %v94
    %v647 = vand.u32 %v646, 4294901760
    %648 = vmatpush1.msra.mxu0 %v647
    %v649 = vsub.f32 %v97, %v97
    %v650 = vand.u32 %v649, 4294901760
    %651 = vmatprep.subr.mxu0 %v650
    %v652 = vsub.f32 %v96, %v96
    %v653 = vand.u32 %v652, 4294901760
    %654 = vmatpush1.msra.mxu0 %v653
    %v655 = vsub.f32 %v99, %v99
    %v656 = vand.u32 %v655, 4294901760
    %657 = vmatprep.subr.mxu0 %v656
    %v658 = vsub.f32 %v98, %v98
    %v659 = vand.u32 %v658, 4294901760
    %660 = vmatpush1.msra.mxu0 %v659
    %v661 = vsub.f32 %v101, %v101
    %v662 = vand.u32 %v661, 4294901760
    %663 = vmatprep.subr.mxu0 %v662
    %v664 = vsub.f32 %v100, %v100
    %v665 = vand.u32 %v664, 4294901760
    %666 = vmatpush1.msra.mxu0 %v665
    %v667 = vsub.f32 %v103, %v103
    %v668 = vand.u32 %v667, 4294901760
    %669 = vmatprep.subr.mxu0 %v668
    %v670 = vsub.f32 %v102, %v102
    %v671 = vand.u32 %v670, 4294901760
    %672 = vmatpush1.msra.mxu0 %v671
    %v673 = vsub.f32 %v105, %v105
    %v674 = vand.u32 %v673, 4294901760
    %675 = vmatprep.subr.mxu0 %v674
    %v676 = vsub.f32 %v104, %v104
    %v677 = vand.u32 %v676, 4294901760
    %678 = vmatpush1.msra.mxu0 %v677
    %v679 = vsub.f32 %v107, %v107
    %v680 = vand.u32 %v679, 4294901760
    %681 = vmatprep.subr.mxu0 %v680
    %v682 = vsub.f32 %v106, %v106
    %v683 = vand.u32 %v682, 4294901760
    %684 = vmatpush1.msra.mxu0 %v683
    %685 = vmatprep.subr.mxu0 0.0
    %686 = vmatpush1.msra.mxu0 0.0
    %687 = vmatprep.subr.mxu0 0.0
    %688 = vmatpush1.msra.mxu0 0.0
    %689 = vmatprep.subr.mxu0 0.0
    %690 = vmatpush1.msra.mxu0 0.0
    %691 = vmatprep.subr.mxu0 0.0
    %692 = vmatpush1.msra.mxu0 0.0
    %693 = vmatprep.subr.mxu0 0.0
    %694 = vmatpush1.msra.mxu0 0.0
    %695 = vmatprep.subr.mxu0 0.0
    %696 = vmatpush1.msra.mxu0 0.0
    %697 = vmatprep.subr.mxu0 0.0
    %698 = vmatpush1.msra.mxu0 0.0
    %699 = vmatprep.subr.mxu0 0.0
    %700 = vmatpush1.msra.mxu0 0.0
    %701 = vmatprep.subr.mxu0 0.0
    %702 = vmatpush1.msra.mxu0 0.0
    %703 = vmatprep.subr.mxu0 0.0
    %704 = vmatpush1.msra.mxu0 0.0
    %705 = vmatprep.subr.mxu0 0.0
    %706 = vmatpush1.msra.mxu0 0.0
    %707 = vmatprep.subr.mxu0 0.0
    %708 = vmatpush1.msra.mxu0 0.0
    %709 = vmatprep.subr.mxu0 0.0
    %710 = vmatpush1.msra.mxu0 0.0
    %711 = vmatprep.subr.mxu0 0.0
    %712 = vmatpush1.msra.mxu0 0.0
    %713 = vmatprep.subr.mxu0 0.0
    %714 = vmatpush1.msra.mxu0 0.0
    %715 = vmatprep.subr.mxu0 0.0
    %716 = vmatpush1.msra.mxu0 0.0
    %717 = vmatprep.subr.mxu0 0.0
    %718 = vmatpush1.msra.mxu0 0.0
    %719 = vmatprep.subr.mxu0 0.0
    %720 = vmatpush1.msra.mxu0 0.0
    %721 = vmatprep.subr.mxu0 0.0
    %722 = vmatpush1.msra.mxu0 0.0
    %723 = vmatprep.subr.mxu0 0.0
    %724 = vmatpush1.msra.mxu0 0.0
    %725 = vmatprep.subr.mxu0 0.0
    %726 = vmatpush1.msra.mxu0 0.0
    %727 = vmatprep.subr.mxu0 0.0
    %728 = vmatpush1.msra.mxu0 0.0
    %729 = vmatprep.subr.mxu0 0.0
    %730 = vmatpush1.msra.mxu0 0.0
    %731 = vmatprep.subr.mxu0 0.0
    %732 = vmatpush1.msra.mxu0 0.0
    %733 = vmatprep.mubr.f32.mxu0 0.0
    %v734 = vand.u32 %v146, 4294901760
    %735 = vmatmul.mubr.f32.gmra.mrb[0].mxu0 %v734
    %v736 = vpop.f32.mrb[0].mxu0
    %v737 = vadd.f32 %v606, %v736
    %v738 = vpop.f32.mrb[0].mxu0
    %v739 = vadd.f32 %v608, %v738
    %740 = vmatprep.mubr.f32.mxu0 0.0
    %v741 = vand.u32 %v149, 4294901760
    %742 = vmatmul.mubr.f32.gmra.mrb[0].mxu0 %v741
    %v743 = vpop.f32.mrb[0].mxu0
    %v744 = vadd.f32 %v615, %v743
    %v745 = vpop.f32.mrb[0].mxu0
    %v746 = vadd.f32 %v617, %v745
    %747 = vmatprep.mubr.f32.mxu0 0.0
    %v748 = vand.u32 %v152, 4294901760
    %749 = vmatmul.mubr.f32.gmra.mrb[0].mxu0 %v748
    %v750 = vpop.f32.mrb[0].mxu0
    %v751 = vadd.f32 %v624, %v750
    %v752 = vpop.f32.mrb[0].mxu0
    %v753 = vadd.f32 %v626, %v752
    %754 = vmatprep.mubr.f32.mxu0 0.0
    %v755 = vand.u32 %v155, 4294901760
    %756 = vmatmul.mubr.f32.gmra.mrb[0].mxu0 %v755
    %v757 = vpop.f32.mrb[0].mxu0
    %v758 = vadd.f32 %v633, %v757
    %v759 = vpop.f32.mrb[0].mxu0
    %v760 = vadd.f32 %v635, %v759
    %761 = vdwg.mxu0
    %762 = vmatprep.subr.mxu0 %v93
    %763 = vmatpush1.msra.mxu0 %v92
    %764 = vmatprep.subr.mxu0 %v95
    %765 = vmatpush1.msra.mxu0 %v94
    %766 = vmatprep.subr.mxu0 %v97
    %767 = vmatpush1.msra.mxu0 %v96
    %768 = vmatprep.subr.mxu0 %v99
    %769 = vmatpush1.msra.mxu0 %v98
    %770 = vmatprep.subr.mxu0 %v101
    %771 = vmatpush1.msra.mxu0 %v100
    %772 = vmatprep.subr.mxu0 %v103
    %773 = vmatpush1.msra.mxu0 %v102
    %774 = vmatprep.subr.mxu0 %v105
    %775 = vmatpush1.msra.mxu0 %v104
    %776 = vmatprep.subr.mxu0 %v107
    %777 = vmatpush1.msra.mxu0 %v106
    %778 = vmatprep.subr.mxu0 0.0
    %779 = vmatpush1.msra.mxu0 0.0
    %780 = vmatprep.subr.mxu0 0.0
    %781 = vmatpush1.msra.mxu0 0.0
    %782 = vmatprep.subr.mxu0 0.0
    %783 = vmatpush1.msra.mxu0 0.0
    %784 = vmatprep.subr.mxu0 0.0
    %785 = vmatpush1.msra.mxu0 0.0
    %786 = vmatprep.subr.mxu0 0.0
    %787 = vmatpush1.msra.mxu0 0.0
    %788 = vmatprep.subr.mxu0 0.0
    %789 = vmatpush1.msra.mxu0 0.0
    %790 = vmatprep.subr.mxu0 0.0
    %791 = vmatpush1.msra.mxu0 0.0
    %792 = vmatprep.subr.mxu0 0.0
    %793 = vmatpush1.msra.mxu0 0.0
    %794 = vmatprep.subr.mxu0 0.0
    %795 = vmatpush1.msra.mxu0 0.0
    %796 = vmatprep.subr.mxu0 0.0
    %797 = vmatpush1.msra.mxu0 0.0
    %798 = vmatprep.subr.mxu0 0.0
    %799 = vmatpush1.msra.mxu0 0.0
    %800 = vmatprep.subr.mxu0 0.0
    %801 = vmatpush1.msra.mxu0 0.0
    %802 = vmatprep.subr.mxu0 0.0
    %803 = vmatpush1.msra.mxu0 0.0
    %804 = vmatprep.subr.mxu0 0.0
    %805 = vmatpush1.msra.mxu0 0.0
    %806 = vmatprep.subr.mxu0 0.0
    %807 = vmatpush1.msra.mxu0 0.0
    %808 = vmatprep.subr.mxu0 0.0
    %809 = vmatpush1.msra.mxu0 0.0
    %810 = vmatprep.subr.mxu0 0.0
    %811 = vmatpush1.msra.mxu0 0.0
    %812 = vmatprep.subr.mxu0 0.0
    %813 = vmatpush1.msra.mxu0 0.0
    %814 = vmatprep.subr.mxu0 0.0
    %815 = vmatpush1.msra.mxu0 0.0
    %816 = vmatprep.subr.mxu0 0.0
    %817 = vmatpush1.msra.mxu0 0.0
    %818 = vmatprep.subr.mxu0 0.0
    %819 = vmatpush1.msra.mxu0 0.0
    %820 = vmatprep.subr.mxu0 0.0
    %821 = vmatpush1.msra.mxu0 0.0
    %822 = vmatprep.subr.mxu0 0.0
    %823 = vmatpush1.msra.mxu0 0.0
    %824 = vmatprep.subr.mxu0 0.0
    %825 = vmatpush1.msra.mxu0 0.0
    %826 = vmatprep.mubr.f32.mxu0 0.0
    %v827 = vand.u32 %v146, 4294901760
    %828 = vmatmul.mubr.f32.gmra.mrb[0].mxu0 %v827
    %v829 = vpop.f32.mrb[0].mxu0
    %v830 = vadd.f32 %v737, %v829
    %v831 = vpop.f32.mrb[0].mxu0
    %v832 = vadd.f32 %v739, %v831
    %833 = vmatprep.mubr.f32.mxu0 0.0
    %v834 = vand.u32 %v149, 4294901760
    %835 = vmatmul.mubr.f32.gmra.mrb[0].mxu0 %v834
    %v836 = vpop.f32.mrb[0].mxu0
    %v837 = vadd.f32 %v744, %v836
    %v838 = vpop.f32.mrb[0].mxu0
    %v839 = vadd.f32 %v746, %v838
    %840 = vmatprep.mubr.f32.mxu0 0.0
    %v841 = vand.u32 %v152, 4294901760
    %842 = vmatmul.mubr.f32.gmra.mrb[0].mxu0 %v841
    %v843 = vpop.f32.mrb[0].mxu0
    %v844 = vadd.f32 %v751, %v843
    %v845 = vpop.f32.mrb[0].mxu0
    %v846 = vadd.f32 %v753, %v845
    %847 = vmatprep.mubr.f32.mxu0 0.0
    %v848 = vand.u32 %v155, 4294901760
    %849 = vmatmul.mubr.f32.gmra.mrb[0].mxu0 %v848
    %v850 = vpop.f32.mrb[0].mxu0
    %v851 = vadd.f32 %v758, %v850
    %v852 = vpop.f32.mrb[0].mxu0
    %v853 = vadd.f32 %v760, %v852
    %854 = vdwg.mxu0
    %v855 = vld [vmem:[#allocation7] sm:$0xff]
    %v856 = vld [vmem:[#allocation7 + $0x8] sm:$0xff]
    %v857 = vld [vmem:[#allocation7 + $0x10] sm:$0xff]
    %v858 = vld [vmem:[#allocation7 + $0x18] sm:$0xff]
    %vm859 = vcmask 392192
    %v861 = vsel %vm859, %v855, 0
    %v864 = vsel %vm859, %v856, 0
    %v867 = vsel %vm859, %v857, 0
    %v870 = vsel %vm859, %v858, 0
    %872 = vmatprep.subr.mxu0 %v129
    %873 = vmatpush1.msra.mxu0 %v128
    %874 = vmatprep.subr.mxu0 %v131
    %875 = vmatpush1.msra.mxu0 %v130
    %876 = vmatprep.subr.mxu0 %v133
    %877 = vmatpush1.msra.mxu0 %v132
    %878 = vmatprep.subr.mxu0 %v135
    %879 = vmatpush1.msra.mxu0 %v134
    %880 = vmatprep.subr.mxu0 %v137
    %881 = vmatpush1.msra.mxu0 %v136
    %882 = vmatprep.subr.mxu0 %v139
    %883 = vmatpush1.msra.mxu0 %v138
    %884 = vmatprep.subr.mxu0 0.0
    %885 = vmatpush1.msra.mxu0 0.0
    %886 = vmatprep.subr.mxu0 0.0
    %887 = vmatpush1.msra.mxu0 0.0
    %888 = vmatprep.subr.mxu0 0.0
    %889 = vmatpush1.msra.mxu0 0.0
    %890 = vmatprep.subr.mxu0 0.0
    %891 = vmatpush1.msra.mxu0 0.0
    %892 = vmatprep.subr.mxu0 0.0
    %893 = vmatpush1.msra.mxu0 0.0
    %894 = vmatprep.subr.mxu0 0.0
    %895 = vmatpush1.msra.mxu0 0.0
    %896 = vmatprep.subr.mxu0 0.0
    %897 = vmatpush1.msra.mxu0 0.0
    %898 = vmatprep.subr.mxu0 0.0
    %899 = vmatpush1.msra.mxu0 0.0
    %900 = vmatprep.subr.mxu0 0.0
    %901 = vmatpush1.msra.mxu0 0.0
    %902 = vmatprep.subr.mxu0 0.0
    %903 = vmatpush1.msra.mxu0 0.0
    %904 = vmatprep.subr.mxu0 0.0
    %905 = vmatpush1.msra.mxu0 0.0
    %906 = vmatprep.subr.mxu0 0.0
    %907 = vmatpush1.msra.mxu0 0.0
    %908 = vmatprep.subr.mxu0 0.0
    %909 = vmatpush1.msra.mxu0 0.0
    %910 = vmatprep.subr.mxu0 0.0
    %911 = vmatpush1.msra.mxu0 0.0
    %912 = vmatprep.subr.mxu0 0.0
    %913 = vmatpush1.msra.mxu0 0.0
    %914 = vmatprep.subr.mxu0 0.0
    %915 = vmatpush1.msra.mxu0 0.0
    %916 = vmatprep.subr.mxu0 0.0
    %917 = vmatpush1.msra.mxu0 0.0
    %918 = vmatprep.subr.mxu0 0.0
    %919 = vmatpush1.msra.mxu0 0.0
    %920 = vmatprep.subr.mxu0 0.0
    %921 = vmatpush1.msra.mxu0 0.0
    %922 = vmatprep.subr.mxu0 0.0
    %923 = vmatpush1.msra.mxu0 0.0
    %924 = vmatprep.subr.mxu0 0.0
    %925 = vmatpush1.msra.mxu0 0.0
    %926 = vmatprep.subr.mxu0 0.0
    %927 = vmatpush1.msra.mxu0 0.0
    %928 = vmatprep.subr.mxu0 0.0
    %929 = vmatpush1.msra.mxu0 0.0
    %930 = vmatprep.subr.mxu0 0.0
    %931 = vmatpush1.msra.mxu0 0.0
    %932 = vmatprep.subr.mxu0 0.0
    %933 = vmatpush1.msra.mxu0 0.0
    %934 = vmatprep.subr.mxu0 0.0
    %935 = vmatpush1.msra.mxu0 0.0
    %936 = vmatprep.mubr.f32.mxu0 0.0
    %v937 = vand.u32 %v861, 4294901760
    %v938 = vsub.f32 %v861, %v937
    %v939 = vand.u32 %v938, 4294901760
    %v940 = vsub.f32 %v938, %v939
    %v941 = vand.u32 %v940, 4294901760
    %942 = vmatmul.mubr.f32.gmra.mrb[0].mxu0 %v941
    %v943 = vpop.f32.mrb[0].mxu0
    %v944 = vadd.f32 0.0, %v943
    %v945 = vpop.f32.mrb[0].mxu0
    %v946 = vadd.f32 0.0, %v945
    %947 = vmatprep.mubr.f32.mxu0 0.0
    %v948 = vand.u32 %v864, 4294901760
    %v949 = vsub.f32 %v864, %v948
    %v950 = vand.u32 %v949, 4294901760
    %v951 = vsub.f32 %v949, %v950
    %v952 = vand.u32 %v951, 4294901760
    %953 = vmatmul.mubr.f32.gmra.mrb[0].mxu0 %v952
    %v954 = vpop.f32.mrb[0].mxu0
    %v955 = vadd.f32 0.0, %v954
    %v956 = vpop.f32.mrb[0].mxu0
    %v957 = vadd.f32 0.0, %v956
    %958 = vmatprep.mubr.f32.mxu0 0.0
    %v959 = vand.u32 %v867, 4294901760
    %v960 = vsub.f32 %v867, %v959
    %v961 = vand.u32 %v960, 4294901760
    %v962 = vsub.f32 %v960, %v961
    %v963 = vand.u32 %v962, 4294901760
    %964 = vmatmul.mubr.f32.gmra.mrb[0].mxu0 %v963
    %v965 = vpop.f32.mrb[0].mxu0
    %v966 = vadd.f32 0.0, %v965
    %v967 = vpop.f32.mrb[0].mxu0
    %v968 = vadd.f32 0.0, %v967
    %969 = vmatprep.mubr.f32.mxu0 0.0
    %v970 = vand.u32 %v870, 4294901760
    %v971 = vsub.f32 %v870, %v970
    %v972 = vand.u32 %v971, 4294901760
    %v973 = vsub.f32 %v971, %v972
    %v974 = vand.u32 %v973, 4294901760
    %975 = vmatmul.mubr.f32.gmra.mrb[0].mxu0 %v974
    %v976 = vpop.f32.mrb[0].mxu0
    %v977 = vadd.f32 0.0, %v976
    %v978 = vpop.f32.mrb[0].mxu0
    %v979 = vadd.f32 0.0, %v978
    %980 = vdwg.mxu0
    %v981 = vsub.f32 %v129, %v129
    %v982 = vand.u32 %v981, 4294901760
    %v983 = vsub.f32 %v981, %v982
    %v984 = vand.u32 %v983, 4294901760
    %985 = vmatprep.subr.mxu0 %v984
    %v986 = vsub.f32 %v128, %v128
    %v987 = vand.u32 %v986, 4294901760
    %v988 = vsub.f32 %v986, %v987
    %v989 = vand.u32 %v988, 4294901760
    %990 = vmatpush1.msra.mxu0 %v989
    %v991 = vsub.f32 %v131, %v131
    %v992 = vand.u32 %v991, 4294901760
    %v993 = vsub.f32 %v991, %v992
    %v994 = vand.u32 %v993, 4294901760
    %995 = vmatprep.subr.mxu0 %v994
    %v996 = vsub.f32 %v130, %v130
    %v997 = vand.u32 %v996, 4294901760
    %v998 = vsub.f32 %v996, %v997
    %v999 = vand.u32 %v998, 4294901760
    %1000 = vmatpush1.msra.mxu0 %v999
    %v1001 = vsub.f32 %v133, %v133
    %v1002 = vand.u32 %v1001, 4294901760
    %v1003 = vsub.f32 %v1001, %v1002
    %v1004 = vand.u32 %v1003, 4294901760
    %1005 = vmatprep.subr.mxu0 %v1004
    %v1006 = vsub.f32 %v132, %v132
    %v1007 = vand.u32 %v1006, 4294901760
    %v1008 = vsub.f32 %v1006, %v1007
    %v1009 = vand.u32 %v1008, 4294901760
    %1010 = vmatpush1.msra.mxu0 %v1009
    %v1011 = vsub.f32 %v135, %v135
    %v1012 = vand.u32 %v1011, 4294901760
    %v1013 = vsub.f32 %v1011, %v1012
    %v1014 = vand.u32 %v1013, 4294901760
    %1015 = vmatprep.subr.mxu0 %v1014
    %v1016 = vsub.f32 %v134, %v134
    %v1017 = vand.u32 %v1016, 4294901760
    %v1018 = vsub.f32 %v1016, %v1017
    %v1019 = vand.u32 %v1018, 4294901760
    %1020 = vmatpush1.msra.mxu0 %v1019
    %v1021 = vsub.f32 %v137, %v137
    %v1022 = vand.u32 %v1021, 4294901760
    %v1023 = vsub.f32 %v1021, %v1022
    %v1024 = vand.u32 %v1023, 4294901760
    %1025 = vmatprep.subr.mxu0 %v1024
    %v1026 = vsub.f32 %v136, %v136
    %v1027 = vand.u32 %v1026, 4294901760
    %v1028 = vsub.f32 %v1026, %v1027
    %v1029 = vand.u32 %v1028, 4294901760
    %1030 = vmatpush1.msra.mxu0 %v1029
    %v1031 = vsub.f32 %v139, %v139
    %v1032 = vand.u32 %v1031, 4294901760
    %v1033 = vsub.f32 %v1031, %v1032
    %v1034 = vand.u32 %v1033, 4294901760
    %1035 = vmatprep.subr.mxu0 %v1034
    %v1036 = vsub.f32 %v138, %v138
    %v1037 = vand.u32 %v1036, 4294901760
    %v1038 = vsub.f32 %v1036, %v1037
    %v1039 = vand.u32 %v1038, 4294901760
    %1040 = vmatpush1.msra.mxu0 %v1039
    %1041 = vmatprep.subr.mxu0 0.0
    %1042 = vmatpush1.msra.mxu0 0.0
    %1043 = vmatprep.subr.mxu0 0.0
    %1044 = vmatpush1.msra.mxu0 0.0
    %1045 = vmatprep.subr.mxu0 0.0
    %1046 = vmatpush1.msra.mxu0 0.0
    %1047 = vmatprep.subr.mxu0 0.0
    %1048 = vmatpush1.msra.mxu0 0.0
    %1049 = vmatprep.subr.mxu0 0.0
    %1050 = vmatpush1.msra.mxu0 0.0
    %1051 = vmatprep.subr.mxu0 0.0
    %1052 = vmatpush1.msra.mxu0 0.0
    %1053 = vmatprep.subr.mxu0 0.0
    %1054 = vmatpush1.msra.mxu0 0.0
    %1055 = vmatprep.subr.mxu0 0.0
    %1056 = vmatpush1.msra.mxu0 0.0
    %1057 = vmatprep.subr.mxu0 0.0
    %1058 = vmatpush1.msra.mxu0 0.0
    %1059 = vmatprep.subr.mxu0 0.0
    %1060 = vmatpush1.msra.mxu0 0.0
    %1061 = vmatprep.subr.mxu0 0.0
    %1062 = vmatpush1.msra.mxu0 0.0
    %1063 = vmatprep.subr.mxu0 0.0
    %1064 = vmatpush1.msra.mxu0 0.0
    %1065 = vmatprep.subr.mxu0 0.0
    %1066 = vmatpush1.msra.mxu0 0.0
    %1067 = vmatprep.subr.mxu0 0.0
    %1068 = vmatpush1.msra.mxu0 0.0
    %1069 = vmatprep.subr.mxu0 0.0
    %1070 = vmatpush1.msra.mxu0 0.0
    %1071 = vmatprep.subr.mxu0 0.0
    %1072 = vmatpush1.msra.mxu0 0.0
    %1073 = vmatprep.subr.mxu0 0.0
    %1074 = vmatpush1.msra.mxu0 0.0
    %1075 = vmatprep.subr.mxu0 0.0
    %1076 = vmatpush1.msra.mxu0 0.0
    %1077 = vmatprep.subr.mxu0 0.0
    %1078 = vmatpush1.msra.mxu0 0.0
    %1079 = vmatprep.subr.mxu0 0.0
    %1080 = vmatpush1.msra.mxu0 0.0
    %1081 = vmatprep.subr.mxu0 0.0
    %1082 = vmatpush1.msra.mxu0 0.0
    %1083 = vmatprep.subr.mxu0 0.0
    %1084 = vmatpush1.msra.mxu0 0.0
    %1085 = vmatprep.subr.mxu0 0.0
    %1086 = vmatpush1.msra.mxu0 0.0
    %1087 = vmatprep.subr.mxu0 0.0
    %1088 = vmatpush1.msra.mxu0 0.0
    %1089 = vmatprep.subr.mxu0 0.0
    %1090 = vmatpush1.msra.mxu0 0.0
    %1091 = vmatprep.subr.mxu0 0.0
    %1092 = vmatpush1.msra.mxu0 0.0
    %1093 = vmatprep.mubr.f32.mxu0 0.0
    %v1094 = vand.u32 %v861, 4294901760
    %1095 = vmatmul.mubr.f32.gmra.mrb[0].mxu0 %v1094
    %v1096 = vpop.f32.mrb[0].mxu0
    %v1097 = vadd.f32 %v944, %v1096
    %v1098 = vpop.f32.mrb[0].mxu0
    %v1099 = vadd.f32 %v946, %v1098
    %1100 = vmatprep.mubr.f32.mxu0 0.0
    %v1101 = vand.u32 %v864, 4294901760
    %1102 = vmatmul.mubr.f32.gmra.mrb[0].mxu0 %v1101
    %v1103 = vpop.f32.mrb[0].mxu0
    %v1104 = vadd.f32 %v955, %v1103
    %v1105 = vpop.f32.mrb[0].mxu0
    %v1106 = vadd.f32 %v957, %v1105
    %1107 = vmatprep.mubr.f32.mxu0 0.0
    %v1108 = vand.u32 %v867, 4294901760
    %1109 = vmatmul.mubr.f32.gmra.mrb[0].mxu0 %v1108
    %v1110 = vpop.f32.mrb[0].mxu0
    %v1111 = vadd.f32 %v966, %v1110
    %v1112 = vpop.f32.mrb[0].mxu0
    %v1113 = vadd.f32 %v968, %v1112
    %1114 = vmatprep.mubr.f32.mxu0 0.0
    %v1115 = vand.u32 %v870, 4294901760
    %1116 = vmatmul.mubr.f32.gmra.mrb[0].mxu0 %v1115
    %v1117 = vpop.f32.mrb[0].mxu0
    %v1118 = vadd.f32 %v977, %v1117
    %v1119 = vpop.f32.mrb[0].mxu0
    %v1120 = vadd.f32 %v979, %v1119
    %1121 = vdwg.mxu0
    %v1122 = vsub.f32 %v129, %v129
    %1123 = vmatprep.subr.mxu0 %v1122
    %v1124 = vsub.f32 %v128, %v128
    %1125 = vmatpush1.msra.mxu0 %v1124
    %v1126 = vsub.f32 %v131, %v131
    %1127 = vmatprep.subr.mxu0 %v1126
    %v1128 = vsub.f32 %v130, %v130
    %1129 = vmatpush1.msra.mxu0 %v1128
    %v1130 = vsub.f32 %v133, %v133
    %1131 = vmatprep.subr.mxu0 %v1130
    %v1132 = vsub.f32 %v132, %v132
    %1133 = vmatpush1.msra.mxu0 %v1132
    %v1134 = vsub.f32 %v135, %v135
    %1135 = vmatprep.subr.mxu0 %v1134
    %v1136 = vsub.f32 %v134, %v134
    %1137 = vmatpush1.msra.mxu0 %v1136
    %v1138 = vsub.f32 %v137, %v137
    %1139 = vmatprep.subr.mxu0 %v1138
    %v1140 = vsub.f32 %v136, %v136
    %1141 = vmatpush1.msra.mxu0 %v1140
    %v1142 = vsub.f32 %v139, %v139
    %1143 = vmatprep.subr.mxu0 %v1142
    %v1144 = vsub.f32 %v138, %v138
    %1145 = vmatpush1.msra.mxu0 %v1144
    %1146 = vmatprep.subr.mxu0 0.0
    %1147 = vmatpush1.msra.mxu0 0.0
    %1148 = vmatprep.subr.mxu0 0.0
    %1149 = vmatpush1.msra.mxu0 0.0
    %1150 = vmatprep.subr.mxu0 0.0
    %1151 = vmatpush1.msra.mxu0 0.0
    %1152 = vmatprep.subr.mxu0 0.0
    %1153 = vmatpush1.msra.mxu0 0.0
    %1154 = vmatprep.subr.mxu0 0.0
    %1155 = vmatpush1.msra.mxu0 0.0
    %1156 = vmatprep.subr.mxu0 0.0
    %1157 = vmatpush1.msra.mxu0 0.0
    %1158 = vmatprep.subr.mxu0 0.0
    %1159 = vmatpush1.msra.mxu0 0.0
    %1160 = vmatprep.subr.mxu0 0.0
    %1161 = vmatpush1.msra.mxu0 0.0
    %1162 = vmatprep.subr.mxu0 0.0
    %1163 = vmatpush1.msra.mxu0 0.0
    %1164 = vmatprep.subr.mxu0 0.0
    %1165 = vmatpush1.msra.mxu0 0.0
    %1166 = vmatprep.subr.mxu0 0.0
    %1167 = vmatpush1.msra.mxu0 0.0
    %1168 = vmatprep.subr.mxu0 0.0
    %1169 = vmatpush1.msra.mxu0 0.0
    %1170 = vmatprep.subr.mxu0 0.0
    %1171 = vmatpush1.msra.mxu0 0.0
    %1172 = vmatprep.subr.mxu0 0.0
    %1173 = vmatpush1.msra.mxu0 0.0
    %1174 = vmatprep.subr.mxu0 0.0
    %1175 = vmatpush1.msra.mxu0 0.0
    %1176 = vmatprep.subr.mxu0 0.0
    %1177 = vmatpush1.msra.mxu0 0.0
    %1178 = vmatprep.subr.mxu0 0.0
    %1179 = vmatpush1.msra.mxu0 0.0
    %1180 = vmatprep.subr.mxu0 0.0
    %1181 = vmatpush1.msra.mxu0 0.0
    %1182 = vmatprep.subr.mxu0 0.0
    %1183 = vmatpush1.msra.mxu0 0.0
    %1184 = vmatprep.subr.mxu0 0.0
    %1185 = vmatpush1.msra.mxu0 0.0
    %1186 = vmatprep.subr.mxu0 0.0
    %1187 = vmatpush1.msra.mxu0 0.0
    %1188 = vmatprep.subr.mxu0 0.0
    %1189 = vmatpush1.msra.mxu0 0.0
    %1190 = vmatprep.subr.mxu0 0.0
    %1191 = vmatpush1.msra.mxu0 0.0
    %1192 = vmatprep.subr.mxu0 0.0
    %1193 = vmatpush1.msra.mxu0 0.0
    %1194 = vmatprep.subr.mxu0 0.0
    %1195 = vmatpush1.msra.mxu0 0.0
    %1196 = vmatprep.subr.mxu0 0.0
    %1197 = vmatpush1.msra.mxu0 0.0
    %1198 = vmatprep.mubr.f32.mxu0 0.0
    %v1199 = vand.u32 %v861, 4294901760
    %v1200 = vsub.f32 %v861, %v1199
    %1201 = vmatmul.mubr.f32.gmra.mrb[0].mxu0 %v1200
    %v1202 = vpop.f32.mrb[0].mxu0
    %v1203 = vadd.f32 %v1097, %v1202
    %v1204 = vpop.f32.mrb[0].mxu0
    %v1205 = vadd.f32 %v1099, %v1204
    %1206 = vmatprep.mubr.f32.mxu0 0.0
    %v1207 = vand.u32 %v864, 4294901760
    %v1208 = vsub.f32 %v864, %v1207
    %1209 = vmatmul.mubr.f32.gmra.mrb[0].mxu0 %v1208
    %v1210 = vpop.f32.mrb[0].mxu0
    %v1211 = vadd.f32 %v1104, %v1210
    %v1212 = vpop.f32.mrb[0].mxu0
    %v1213 = vadd.f32 %v1106, %v1212
    %1214 = vmatprep.mubr.f32.mxu0 0.0
    %v1215 = vand.u32 %v867, 4294901760
    %v1216 = vsub.f32 %v867, %v1215
    %1217 = vmatmul.mubr.f32.gmra.mrb[0].mxu0 %v1216
    %v1218 = vpop.f32.mrb[0].mxu0
    %v1219 = vadd.f32 %v1111, %v1218
    %v1220 = vpop.f32.mrb[0].mxu0
    %v1221 = vadd.f32 %v1113, %v1220
    %1222 = vmatprep.mubr.f32.mxu0 0.0
    %v1223 = vand.u32 %v870, 4294901760
    %v1224 = vsub.f32 %v870, %v1223
    %1225 = vmatmul.mubr.f32.gmra.mrb[0].mxu0 %v1224
    %v1226 = vpop.f32.mrb[0].mxu0
    %v1227 = vadd.f32 %v1118, %v1226
    %v1228 = vpop.f32.mrb[0].mxu0
    %v1229 = vadd.f32 %v1120, %v1228
    %1230 = vdwg.mxu0
    %1231 = vmatprep.subr.mxu0 %v129
    %1232 = vmatpush1.msra.mxu0 %v128
    %1233 = vmatprep.subr.mxu0 %v131
    %1234 = vmatpush1.msra.mxu0 %v130
    %1235 = vmatprep.subr.mxu0 %v133
    %1236 = vmatpush1.msra.mxu0 %v132
    %1237 = vmatprep.subr.mxu0 %v135
    %1238 = vmatpush1.msra.mxu0 %v134
    %1239 = vmatprep.subr.mxu0 %v137
    %1240 = vmatpush1.msra.mxu0 %v136
    %1241 = vmatprep.subr.mxu0 %v139
    %1242 = vmatpush1.msra.mxu0 %v138
    %1243 = vmatprep.subr.mxu0 0.0
    %1244 = vmatpush1.msra.mxu0 0.0
    %1245 = vmatprep.subr.mxu0 0.0
    %1246 = vmatpush1.msra.mxu0 0.0
    %1247 = vmatprep.subr.mxu0 0.0
    %1248 = vmatpush1.msra.mxu0 0.0
    %1249 = vmatprep.subr.mxu0 0.0
    %1250 = vmatpush1.msra.mxu0 0.0
    %1251 = vmatprep.subr.mxu0 0.0
    %1252 = vmatpush1.msra.mxu0 0.0
    %1253 = vmatprep.subr.mxu0 0.0
    %1254 = vmatpush1.msra.mxu0 0.0
    %1255 = vmatprep.subr.mxu0 0.0
    %1256 = vmatpush1.msra.mxu0 0.0
    %1257 = vmatprep.subr.mxu0 0.0
    %1258 = vmatpush1.msra.mxu0 0.0
    %1259 = vmatprep.subr.mxu0 0.0
    %1260 = vmatpush1.msra.mxu0 0.0
    %1261 = vmatprep.subr.mxu0 0.0
    %1262 = vmatpush1.msra.mxu0 0.0
    %1263 = vmatprep.subr.mxu0 0.0
    %1264 = vmatpush1.msra.mxu0 0.0
    %1265 = vmatprep.subr.mxu0 0.0
    %1266 = vmatpush1.msra.mxu0 0.0
    %1267 = vmatprep.subr.mxu0 0.0
    %1268 = vmatpush1.msra.mxu0 0.0
    %1269 = vmatprep.subr.mxu0 0.0
    %1270 = vmatpush1.msra.mxu0 0.0
    %1271 = vmatprep.subr.mxu0 0.0
    %1272 = vmatpush1.msra.mxu0 0.0
    %1273 = vmatprep.subr.mxu0 0.0
    %1274 = vmatpush1.msra.mxu0 0.0
    %1275 = vmatprep.subr.mxu0 0.0
    %1276 = vmatpush1.msra.mxu0 0.0
    %1277 = vmatprep.subr.mxu0 0.0
    %1278 = vmatpush1.msra.mxu0 0.0
    %1279 = vmatprep.subr.mxu0 0.0
    %1280 = vmatpush1.msra.mxu0 0.0
    %1281 = vmatprep.subr.mxu0 0.0
    %1282 = vmatpush1.msra.mxu0 0.0
    %1283 = vmatprep.subr.mxu0 0.0
    %1284 = vmatpush1.msra.mxu0 0.0
    %1285 = vmatprep.subr.mxu0 0.0
    %1286 = vmatpush1.msra.mxu0 0.0
    %1287 = vmatprep.subr.mxu0 0.0
    %1288 = vmatpush1.msra.mxu0 0.0
    %1289 = vmatprep.subr.mxu0 0.0
    %1290 = vmatpush1.msra.mxu0 0.0
    %1291 = vmatprep.subr.mxu0 0.0
    %1292 = vmatpush1.msra.mxu0 0.0
    %1293 = vmatprep.subr.mxu0 0.0
    %1294 = vmatpush1.msra.mxu0 0.0
    %1295 = vmatprep.mubr.f32.mxu0 0.0
    %v1296 = vand.u32 %v861, 4294901760
    %v1297 = vsub.f32 %v861, %v1296
    %v1298 = vand.u32 %v1297, 4294901760
    %1299 = vmatmul.mubr.f32.gmra.mrb[0].mxu0 %v1298
    %v1300 = vpop.f32.mrb[0].mxu0
    %v1301 = vadd.f32 %v1203, %v1300
    %v1302 = vpop.f32.mrb[0].mxu0
    %v1303 = vadd.f32 %v1205, %v1302
    %1304 = vmatprep.mubr.f32.mxu0 0.0
    %v1305 = vand.u32 %v864, 4294901760
    %v1306 = vsub.f32 %v864, %v1305
    %v1307 = vand.u32 %v1306, 4294901760
    %1308 = vmatmul.mubr.f32.gmra.mrb[0].mxu0 %v1307
    %v1309 = vpop.f32.mrb[0].mxu0
    %v1310 = vadd.f32 %v1211, %v1309
    %v1311 = vpop.f32.mrb[0].mxu0
    %v1312 = vadd.f32 %v1213, %v1311
    %1313 = vmatprep.mubr.f32.mxu0 0.0
    %v1314 = vand.u32 %v867, 4294901760
    %v1315 = vsub.f32 %v867, %v1314
    %v1316 = vand.u32 %v1315, 4294901760
    %1317 = vmatmul.mubr.f32.gmra.mrb[0].mxu0 %v1316
    %v1318 = vpop.f32.mrb[0].mxu0
    %v1319 = vadd.f32 %v1219, %v1318
    %v1320 = vpop.f32.mrb[0].mxu0
    %v1321 = vadd.f32 %v1221, %v1320
    %1322 = vmatprep.mubr.f32.mxu0 0.0
    %v1323 = vand.u32 %v870, 4294901760
    %v1324 = vsub.f32 %v870, %v1323
    %v1325 = vand.u32 %v1324, 4294901760
    %1326 = vmatmul.mubr.f32.gmra.mrb[0].mxu0 %v1325
    %v1327 = vpop.f32.mrb[0].mxu0
    %v1328 = vadd.f32 %v1227, %v1327
    %v1329 = vpop.f32.mrb[0].mxu0
    %v1330 = vadd.f32 %v1229, %v1329
    %1331 = vdwg.mxu0
    %v1332 = vsub.f32 %v129, %v129
    %v1333 = vand.u32 %v1332, 4294901760
    %1334 = vmatprep.subr.mxu0 %v1333
    %v1335 = vsub.f32 %v128, %v128
    %v1336 = vand.u32 %v1335, 4294901760
    %1337 = vmatpush1.msra.mxu0 %v1336
    %v1338 = vsub.f32 %v131, %v131
    %v1339 = vand.u32 %v1338, 4294901760
    %1340 = vmatprep.subr.mxu0 %v1339
    %v1341 = vsub.f32 %v130, %v130
    %v1342 = vand.u32 %v1341, 4294901760
    %1343 = vmatpush1.msra.mxu0 %v1342
    %v1344 = vsub.f32 %v133, %v133
    %v1345 = vand.u32 %v1344, 4294901760
    %1346 = vmatprep.subr.mxu0 %v1345
    %v1347 = vsub.f32 %v132, %v132
    %v1348 = vand.u32 %v1347, 4294901760
    %1349 = vmatpush1.msra.mxu0 %v1348
    %v1350 = vsub.f32 %v135, %v135
    %v1351 = vand.u32 %v1350, 4294901760
    %1352 = vmatprep.subr.mxu0 %v1351
    %v1353 = vsub.f32 %v134, %v134
    %v1354 = vand.u32 %v1353, 4294901760
    %1355 = vmatpush1.msra.mxu0 %v1354
    %v1356 = vsub.f32 %v137, %v137
    %v1357 = vand.u32 %v1356, 4294901760
    %1358 = vmatprep.subr.mxu0 %v1357
    %v1359 = vsub.f32 %v136, %v136
    %v1360 = vand.u32 %v1359, 4294901760
    %1361 = vmatpush1.msra.mxu0 %v1360
    %v1362 = vsub.f32 %v139, %v139
    %v1363 = vand.u32 %v1362, 4294901760
    %1364 = vmatprep.subr.mxu0 %v1363
    %v1365 = vsub.f32 %v138, %v138
    %v1366 = vand.u32 %v1365, 4294901760
    %1367 = vmatpush1.msra.mxu0 %v1366
    %1368 = vmatprep.subr.mxu0 0.0
    %1369 = vmatpush1.msra.mxu0 0.0
    %1370 = vmatprep.subr.mxu0 0.0
    %1371 = vmatpush1.msra.mxu0 0.0
    %1372 = vmatprep.subr.mxu0 0.0
    %1373 = vmatpush1.msra.mxu0 0.0
    %1374 = vmatprep.subr.mxu0 0.0
    %1375 = vmatpush1.msra.mxu0 0.0
    %1376 = vmatprep.subr.mxu0 0.0
    %1377 = vmatpush1.msra.mxu0 0.0
    %1378 = vmatprep.subr.mxu0 0.0
    %1379 = vmatpush1.msra.mxu0 0.0
    %1380 = vmatprep.subr.mxu0 0.0
    %1381 = vmatpush1.msra.mxu0 0.0
    %1382 = vmatprep.subr.mxu0 0.0
    %1383 = vmatpush1.msra.mxu0 0.0
    %1384 = vmatprep.subr.mxu0 0.0
    %1385 = vmatpush1.msra.mxu0 0.0
    %1386 = vmatprep.subr.mxu0 0.0
    %1387 = vmatpush1.msra.mxu0 0.0
    %1388 = vmatprep.subr.mxu0 0.0
    %1389 = vmatpush1.msra.mxu0 0.0
    %1390 = vmatprep.subr.mxu0 0.0
    %1391 = vmatpush1.msra.mxu0 0.0
    %1392 = vmatprep.subr.mxu0 0.0
    %1393 = vmatpush1.msra.mxu0 0.0
    %1394 = vmatprep.subr.mxu0 0.0
    %1395 = vmatpush1.msra.mxu0 0.0
    %1396 = vmatprep.subr.mxu0 0.0
    %1397 = vmatpush1.msra.mxu0 0.0
    %1398 = vmatprep.subr.mxu0 0.0
    %1399 = vmatpush1.msra.mxu0 0.0
    %1400 = vmatprep.subr.mxu0 0.0
    %1401 = vmatpush1.msra.mxu0 0.0
    %1402 = vmatprep.subr.mxu0 0.0
    %1403 = vmatpush1.msra.mxu0 0.0
    %1404 = vmatprep.subr.mxu0 0.0
    %1405 = vmatpush1.msra.mxu0 0.0
    %1406 = vmatprep.subr.mxu0 0.0
    %1407 = vmatpush1.msra.mxu0 0.0
    %1408 = vmatprep.subr.mxu0 0.0
    %1409 = vmatpush1.msra.mxu0 0.0
    %1410 = vmatprep.subr.mxu0 0.0
    %1411 = vmatpush1.msra.mxu0 0.0
    %1412 = vmatprep.subr.mxu0 0.0
    %1413 = vmatpush1.msra.mxu0 0.0
    %1414 = vmatprep.subr.mxu0 0.0
    %1415 = vmatpush1.msra.mxu0 0.0
    %1416 = vmatprep.subr.mxu0 0.0
    %1417 = vmatpush1.msra.mxu0 0.0
    %1418 = vmatprep.subr.mxu0 0.0
    %1419 = vmatpush1.msra.mxu0 0.0
    %1420 = vmatprep.mubr.f32.mxu0 0.0
    %v1421 = vand.u32 %v861, 4294901760
    %1422 = vmatmul.mubr.f32.gmra.mrb[0].mxu0 %v1421
    %v1423 = vpop.f32.mrb[0].mxu0
    %v1424 = vadd.f32 %v1301, %v1423
    %v1425 = vpop.f32.mrb[0].mxu0
    %v1426 = vadd.f32 %v1303, %v1425
    %1427 = vmatprep.mubr.f32.mxu0 0.0
    %v1428 = vand.u32 %v864, 4294901760
    %1429 = vmatmul.mubr.f32.gmra.mrb[0].mxu0 %v1428
    %v1430 = vpop.f32.mrb[0].mxu0
    %v1431 = vadd.f32 %v1310, %v1430
    %v1432 = vpop.f32.mrb[0].mxu0
    %v1433 = vadd.f32 %v1312, %v1432
    %1434 = vmatprep.mubr.f32.mxu0 0.0
    %v1435 = vand.u32 %v867, 4294901760
    %1436 = vmatmul.mubr.f32.gmra.mrb[0].mxu0 %v1435
    %v1437 = vpop.f32.mrb[0].mxu0
    %v1438 = vadd.f32 %v1319, %v1437
    %v1439 = vpop.f32.mrb[0].mxu0
    %v1440 = vadd.f32 %v1321, %v1439
    %1441 = vmatprep.mubr.f32.mxu0 0.0
    %v1442 = vand.u32 %v870, 4294901760
    %1443 = vmatmul.mubr.f32.gmra.mrb[0].mxu0 %v1442
    %v1444 = vpop.f32.mrb[0].mxu0
    %v1445 = vadd.f32 %v1328, %v1444
    %v1446 = vpop.f32.mrb[0].mxu0
    %v1447 = vadd.f32 %v1330, %v1446
    %1448 = vdwg.mxu0
    %1449 = vmatprep.subr.mxu0 %v129
    %1450 = vmatpush1.msra.mxu0 %v128
    %1451 = vmatprep.subr.mxu0 %v131
    %1452 = vmatpush1.msra.mxu0 %v130
    %1453 = vmatprep.subr.mxu0 %v133
    %1454 = vmatpush1.msra.mxu0 %v132
    %1455 = vmatprep.subr.mxu0 %v135
    %1456 = vmatpush1.msra.mxu0 %v134
    %1457 = vmatprep.subr.mxu0 %v137
    %1458 = vmatpush1.msra.mxu0 %v136
    %1459 = vmatprep.subr.mxu0 %v139
    %1460 = vmatpush1.msra.mxu0 %v138
    %1461 = vmatprep.subr.mxu0 0.0
    %1462 = vmatpush1.msra.mxu0 0.0
    %1463 = vmatprep.subr.mxu0 0.0
    %1464 = vmatpush1.msra.mxu0 0.0
    %1465 = vmatprep.subr.mxu0 0.0
    %1466 = vmatpush1.msra.mxu0 0.0
    %1467 = vmatprep.subr.mxu0 0.0
    %1468 = vmatpush1.msra.mxu0 0.0
    %1469 = vmatprep.subr.mxu0 0.0
    %1470 = vmatpush1.msra.mxu0 0.0
    %1471 = vmatprep.subr.mxu0 0.0
    %1472 = vmatpush1.msra.mxu0 0.0
    %1473 = vmatprep.subr.mxu0 0.0
    %1474 = vmatpush1.msra.mxu0 0.0
    %1475 = vmatprep.subr.mxu0 0.0
    %1476 = vmatpush1.msra.mxu0 0.0
    %1477 = vmatprep.subr.mxu0 0.0
    %1478 = vmatpush1.msra.mxu0 0.0
    %1479 = vmatprep.subr.mxu0 0.0
    %1480 = vmatpush1.msra.mxu0 0.0
    %1481 = vmatprep.subr.mxu0 0.0
    %1482 = vmatpush1.msra.mxu0 0.0
    %1483 = vmatprep.subr.mxu0 0.0
    %1484 = vmatpush1.msra.mxu0 0.0
    %1485 = vmatprep.subr.mxu0 0.0
    %1486 = vmatpush1.msra.mxu0 0.0
    %1487 = vmatprep.subr.mxu0 0.0
    %1488 = vmatpush1.msra.mxu0 0.0
    %1489 = vmatprep.subr.mxu0 0.0
    %1490 = vmatpush1.msra.mxu0 0.0
    %1491 = vmatprep.subr.mxu0 0.0
    %1492 = vmatpush1.msra.mxu0 0.0
    %1493 = vmatprep.subr.mxu0 0.0
    %1494 = vmatpush1.msra.mxu0 0.0
    %1495 = vmatprep.subr.mxu0 0.0
    %1496 = vmatpush1.msra.mxu0 0.0
    %1497 = vmatprep.subr.mxu0 0.0
    %1498 = vmatpush1.msra.mxu0 0.0
    %1499 = vmatprep.subr.mxu0 0.0
    %1500 = vmatpush1.msra.mxu0 0.0
    %1501 = vmatprep.subr.mxu0 0.0
    %1502 = vmatpush1.msra.mxu0 0.0
    %1503 = vmatprep.subr.mxu0 0.0
    %1504 = vmatpush1.msra.mxu0 0.0
    %1505 = vmatprep.subr.mxu0 0.0
    %1506 = vmatpush1.msra.mxu0 0.0
    %1507 = vmatprep.subr.mxu0 0.0
    %1508 = vmatpush1.msra.mxu0 0.0
    %1509 = vmatprep.subr.mxu0 0.0
    %1510 = vmatpush1.msra.mxu0 0.0
    %1511 = vmatprep.subr.mxu0 0.0
    %1512 = vmatpush1.msra.mxu0 0.0
    %1513 = vmatprep.mubr.f32.mxu0 0.0
    %v1514 = vand.u32 %v861, 4294901760
    %1515 = vmatmul.mubr.f32.gmra.mrb[0].mxu0 %v1514
    %v1516 = vpop.f32.mrb[0].mxu0
    %v1517 = vadd.f32 %v1424, %v1516
    %v1518 = vpop.f32.mrb[0].mxu0
    %v1519 = vadd.f32 %v1426, %v1518
    %1520 = vmatprep.mubr.f32.mxu0 0.0
    %v1521 = vand.u32 %v864, 4294901760
    %1522 = vmatmul.mubr.f32.gmra.mrb[0].mxu0 %v1521
    %v1523 = vpop.f32.mrb[0].mxu0
    %v1524 = vadd.f32 %v1431, %v1523
    %v1525 = vpop.f32.mrb[0].mxu0
    %v1526 = vadd.f32 %v1433, %v1525
    %1527 = vmatprep.mubr.f32.mxu0 0.0
    %v1528 = vand.u32 %v867, 4294901760
    %1529 = vmatmul.mubr.f32.gmra.mrb[0].mxu0 %v1528
    %v1530 = vpop.f32.mrb[0].mxu0
    %v1531 = vadd.f32 %v1438, %v1530
    %v1532 = vpop.f32.mrb[0].mxu0
    %v1533 = vadd.f32 %v1440, %v1532
    %1534 = vmatprep.mubr.f32.mxu0 0.0
    %v1535 = vand.u32 %v870, 4294901760
    %1536 = vmatmul.mubr.f32.gmra.mrb[0].mxu0 %v1535
    %v1537 = vpop.f32.mrb[0].mxu0
    %v1538 = vadd.f32 %v1445, %v1537
    %v1539 = vpop.f32.mrb[0].mxu0
    %v1540 = vadd.f32 %v1447, %v1539
    %1541 = vdwg.mxu0
    %v1542 = vmul.f32 %v830, %v1517
    %v1543 = vmul.f32 %v832, %v1519
    %v1544 = vmul.f32 %v837, %v1524
    %v1545 = vmul.f32 %v839, %v1526
    %v1546 = vmul.f32 %v844, %v1531
    %v1547 = vmul.f32 %v846, %v1533
    %v1548 = vmul.f32 %v851, %v1538
    %v1549 = vmul.f32 %v853, %v1540
    %v1550 = vadd.f32 %v1542, %v1544
    %v1551 = vadd.f32 %v1550, %v1546
    %v1552 = vadd.f32 %v1551, %v1548
    %v1553 = vrot.slane %v1552, 4
    %v1554 = vadd.f32 %v1552, %v1553
    %v1555 = vrot.slane %v1554, 2
    %v1556 = vadd.f32 %v1554, %v1555
    %v1557 = vrot.slane %v1556, 1
    %v1558 = vadd.f32 %v1556, %v1557
    %v1559 = vadd.f32 %v1543, %v1545
    %v1560 = vadd.f32 %v1559, %v1547
    %v1561 = vadd.f32 %v1560, %v1549
    %v1562 = vrot.slane %v1561, 4
    %v1563 = vadd.f32 %v1561, %v1562
    %v1564 = vrot.slane %v1563, 2
    %v1565 = vadd.f32 %v1563, %v1564
    %v1566 = vrot.slane %v1565, 1
    %v1567 = vadd.f32 %v1565, %v1566
    %v1570 = vcombine.low %v1558, %v1567
    %v1572 = vunpack.c.l.s4 1966171168
    %v1573 = vunpack.c.0.s8 %v1572
    %v1574 = vlaneseq
    %v1575 = vshrl.u32 %v1574, 7
    %v1576 = vsub.s32 %v1573, %v1575
    %v1577 = vrot.slane %v1570, %v1576
    %v1579 = vunpack.c.l.s4 1966171168
    %v1580 = vunpack.c.0.s8 %v1579
    %v1581 = vlaneseq
    %v1582 = vshrl.u32 %v1581, 7
    %v1583 = vsub.s32 %v1580, %v1582
    %v1584 = vrot.slane %v1577, %v1583
    %v1586 = vlaneseq
    %vm1587 = vcmp.ge.s32.totalorder %v1586, 0
    %vm1588 = vcmp.lt.s32.totalorder %v1586, 256
    %vm1589 = vmand %vm1587, %vm1588
    %1590 = vst.msk [vmem:[#allocation8] sm:$0x3] %vm1589, %v1584
    // Predicated region
    $region30: #{tpu_custom_call.1} parent=1 // pred_check
      _
    $region31: #{tpu_custom_call.1} parent=1 // pred_check_branch
      %1592 = sbr.rel (0) target = $region33
    $region32: #{tpu_custom_call.1} parent=1 // pred_region
      %s1594 = ssub.s32 32, 32
      %1595 = vsyncadd [#allocation4], %s1594
      %s1597 = sshll.u32 [#allocation8], 4
      %s1598 = int_to_ptr.vmem [resolvable:$true] %s1597
      %1600 = dma.vmem_to_hbm [thread:$0]  %s1598, 32, %s4, [#allocation4]
    $region33: #{tpu_custom_call.1} parent=1 // pred_fallthru
      _
    // Predicated region
    $region34: #{tpu_custom_call.1} parent=1 // pred_check
      _
    $region35: #{tpu_custom_call.1} parent=1 // pred_check_branch
      %1602 = sbr.rel (0) target = $region37
    $region36: #{tpu_custom_call.1} parent=1 // pred_region
      %1603 = dma.done [#allocation4], 32
    $region37: #{tpu_custom_call.1} parent=1 // pred_fallthru
      _
    %1604 = vsyncpa [#allocation3], 1
    %1605 = vsyncpa [#allocation6], 1
    %1606 = vsyncpa [#allocation4], 1

</llo_original>
